<compile_context>
chip_gen: v7x
topology: tpu7x:2x2x1
jax: 0.10.0
libtpu: 0.0.40
codegen_flags: <defaults>
</compile_context>

<pallas_src>
REGION_NUM_ = 8
DRCONV_POSITION_ = (1, 1)   # both convs of the double conv are DRConv2d

import functools
import math

import jax
import jax.numpy as jnp
from jax import lax
from jax.experimental import pallas as pl
from jax.experimental.pallas import tpu as pltpu


def _round_up(v, m):
    return -(-v // m) * m


# ----------------------------------------------------------------------------------------------
# Pallas kernel: one (batch, row-band) grid cell of
#   dynamic-region conv + guide conv (one fused GEMM) + region argmax/select + BN + ReLU + mask.
# Channels live on sublanes, flattened band pixels on lanes (lane-dense outputs).
# ----------------------------------------------------------------------------------------------
def _drconv_bn_relu_kernel(x_hbm, w_ref, bg_ref, scale_ref, shift_ref, mask_ref,
                           out_ref, guide_ref, buf, sem, *,
                           region_num, c_out_p, m_out, mc_pad, n_bands, tap_offsets):
    b = pl.program_id(0)
    q = pl.program_id(1)
    slot = q & 1

    def band_copy(bb, qq, sl):
        start = pl.multiple_of(qq * m_out, 128)
        return pltpu.make_async_copy(
            x_hbm.at[bb, :, pl.ds(start, mc_pad)], buf.at[sl], sem.at[sl])

    # prime the double-buffer at the first band of every batch element (keeps the batch axis
    # safely "parallel" for v7x megacore sharding)
    @pl.when(q == 0)
    def _():
        band_copy(b, q, 0).start()

    # wait for the current band's haloed chunk
    band_copy(b, q, slot).wait()

    # prefetch the next band of the same batch element while we compute this one
    @pl.when(q + 1 < n_bands)
    def _():
        band_copy(b, q + 1, 1 - slot).start()

    xb = buf[slot]                                                      # (cin_p, mc_pad) bf16

    # im2col: fold the 9 taps into the contraction dimension -> a single MXU matmul
    xcol = jnp.concatenate([xb[:, off:off + m_out] for off in tap_offsets], axis=0)
    acc = jnp.dot(w_ref[0], xcol, preferred_element_type=jnp.float32)   # (Ncat, M) f32

    n_conv = region_num * c_out_p
    conv = acc[:n_conv, :]                                              # (R*Coutp, M)
    guide = acc[n_conv:, :] + bg_ref[...]                               # (R, M)
    guide_ref[0] = guide

    # argmax over regions, first-max wins (matches torch.argmax + one-hot scatter_)
    gmax = jnp.max(guide, axis=0, keepdims=True)                        # (1, M)
    r_iota = lax.broadcasted_iota(jnp.int32, guide.shape, 0)            # (R, M)
    first_idx = jnp.min(jnp.where(guide == gmax, r_iota, region_num),
                        axis=0, keepdims=True)                          # (1, M)

    # cheap one-hot region select: unrolled loop over R with (1, M) masks
    conv3 = conv.reshape(region_num, c_out_p, m_out)
    sel = jnp.where(first_idx == 0, conv3[0], 0.0)
    for r in range(1, region_num):
        sel = sel + jnp.where(first_idx == r, conv3[r], 0.0)            # (Coutp, M)

    # folded BatchNorm (running stats) + ReLU, then zero halo/junk positions so the output is
    # directly the next layer's padded band-flat input; store bf16 (half the HBM writes).
    y = jnp.maximum(sel * scale_ref[...] + shift_ref[...], 0.0)
    out_ref[0] = (y * mask_ref[0]).astype(out_ref.dtype)


def drconv_bn_relu_pallas(xf, wcat, bguide, scale, shift, mask, *,
                          region_num, c_out_p, m_out, mc_pad, n_bands, tap_offsets,
                          vmem_limit):
    B, cin_p, _ = xf.shape
    ncat = wcat.shape[1]
    kernel = functools.partial(
        _drconv_bn_relu_kernel, region_num=region_num, c_out_p=c_out_p,
        m_out=m_out, mc_pad=mc_pad, n_bands=n_bands, tap_offsets=tap_offsets)
    return pl.pallas_call(
        kernel,
        out_shape=(jax.ShapeDtypeStruct((B, c_out_p, n_bands * m_out), jnp.bfloat16),
                   jax.ShapeDtypeStruct((B, region_num, n_bands * m_out), jnp.float32)),
        grid=(B, n_bands),                                              # band axis innermost
        in_specs=[
            pl.BlockSpec(memory_space=pl.ANY),                          # padded flat image (HBM, manual DMA)
            pl.BlockSpec((1, ncat, 9 * cin_p), lambda b, q: (b, 0, 0)), # fused dyn+guide weights (per batch)
            pl.BlockSpec((region_num, 1), lambda b, q: (0, 0)),         # guide bias
            pl.BlockSpec((c_out_p, 1), lambda b, q: (0, 0)),            # BN scale
            pl.BlockSpec((c_out_p, 1), lambda b, q: (0, 0)),            # BN shift
            pl.BlockSpec((1, 1, m_out), lambda b, q: (q, 0, 0)),        # validity mask per band
        ],
        out_specs=(pl.BlockSpec((1, c_out_p, m_out), lambda b, q: (b, 0, q)),
                   pl.BlockSpec((1, region_num, m_out), lambda b, q: (b, 0, q))),
        scratch_shapes=[pltpu.VMEM((2, cin_p, mc_pad), jnp.bfloat16),   # double-buffered haloed chunks
                        pltpu.SemaphoreType.DMA((2,))],
        compiler_params=pltpu.CompilerParams(
            dimension_semantics=("parallel", "arbitrary"),
            vmem_limit_bytes=vmem_limit),
    )(xf, wcat, bguide, scale, shift, mask)


# ----------------------------------------------------------------------------------------------
# Geometry / layout helpers (cheap, contiguous host-side ops only; no gathers)
# ----------------------------------------------------------------------------------------------
def _per_lane_bytes(cin_p, c_out_p, region_num):
    ncat = region_num * c_out_p + region_num
    return (4 * (ncat + region_num * c_out_p + 3 * c_out_p + 3 * region_num + 2)   # f32 acc+epilogue
            + 2 * (11 * cin_p + 2 * c_out_p))                                       # bf16 chunks/im2col/out


def _band_geometry(H, W, per_lane_bytes, vmem_budget=20 * 1024 * 1024, max_lanes=4096):
    Wq = _round_up(W + 2, 8)               # padded row width (>= W+2), multiple of 8
    tr_base = 128 // math.gcd(Wq, 128)     # rows per band so band length is a multiple of 128
    rows_needed = H + 2
    mult = 1                               # grow band height while it fits the VMEM budget
    while (tr_base * mult < rows_needed
           and tr_base * (mult + 1) * Wq <= max_lanes
           and tr_base * (mult + 1) * Wq * per_lane_bytes <= vmem_budget):
        mult += 1
    TR = tr_base * mult
    n_bands = -(-rows_needed // TR)
    Hq = n_bands * TR
    M = TR * Wq                            # flattened band length (lane-dense output tile)
    Mc_pad = _round_up(M + 2 * Wq + 2, 128)  # band + 3x3 halo, padded for the DMA buffer
    return dict(Wq=Wq, TR=TR, n_bands=n_bands, Hq=Hq, M=M, Mc_pad=Mc_pad)


def _vmem_estimate(cin_p, ncat, c_out_p, region_num, M, Mc_pad):
    return (2 * cin_p * Mc_pad * 2 + 2 * ncat * 9 * cin_p * 2
            + 2 * c_out_p * M * 2 + 2 * region_num * M * 4 + 2 * M * 4
            + 9 * cin_p * M * 2 + ncat * M * 4
            + (region_num * c_out_p + 3 * c_out_p + 2 * region_num) * M * 4)


def _to_padded_flat(x, geom, cin_p):
    # (B, C, H, W) f32 -> (B, cin_p, Hq*Wq) bf16 with the zero conv-padding ring baked in
    B, C, H, W = x.shape
    Hq, Wq = geom['Hq'], geom['Wq']
    xq = jnp.pad(x, ((0, 0), (0, cin_p - C), (1, Hq - H - 1), (1, Wq - W - 1)))
    return xq.reshape(B, cin_p, Hq * Wq).astype(jnp.bfloat16)


def _pad_flat_for_dma(xflat, geom):
    Wq, M, n_bands, Mc_pad = geom['Wq'], geom['M'], geom['n_bands'], geom['Mc_pad']
    Lp = (n_bands - 1) * M + Mc_pad
    lead = Wq + 1
    tail = Lp - lead - xflat.shape[-1]
    return jnp.pad(xflat, ((0, 0), (0, 0), (lead, tail)))


def _valid_mask(H, W, geom):
    Hq, Wq, n_bands, M = geom['Hq'], geom['Wq'], geom['n_bands'], geom['M']
    g = jnp.arange(Hq * Wq, dtype=jnp.int32)
    row, col = g // Wq, g % Wq
    valid = (row >= 1) & (row <= H) & (col >= 1) & (col <= W)
    return valid.astype(jnp.float32).reshape(n_bands, 1, M)


def _adaptive_pool_matrix(in_size, padded_size, out_size):
    # (out, padded) averaging matrix matching torch.nn.AdaptiveAvgPool2d, offset by the 1-px pad
    rows = []
    for i in range(out_size):
        s = (i * in_size) // out_size
        e = -(-((i + 1) * in_size) // out_size)
        rows.append(jnp.zeros((padded_size,), jnp.float32).at[1 + s:1 + e].set(1.0 / (e - s)))
    return jnp.stack(rows)


def grouped_conv1x1(x, w, b, groups):
    # x: (B, Cin, H, W); w: (Cout, Cin//groups); b: (Cout,)
    B, Cin, H, W = x.shape
    Cout = w.shape[0]
    xg = x.reshape(B, groups, Cin // groups, H, W)
    wg = w.reshape(groups, Cout // groups, Cin // groups)
    y = jnp.einsum('bgihw,goi->bgohw', xg, wg).reshape(B, Cout, H, W)
    return y + b[None, :, None, None]


# ----------------------------------------------------------------------------------------------
# One DRConv2d(k=3, pad=1) + BatchNorm2d + ReLU block, operating on / producing padded band-flat
# bf16 activations (B, C_pad, Hq*Wq) so layers chain without crop/re-pad HBM round trips.
# ----------------------------------------------------------------------------------------------
def drconv_bn_relu_layer(xflat, p, geom, *, region_num, in_c, out_c, H, W):
    B, cin_p, _ = xflat.shape
    Wq, Hq, M, n_bands, Mc_pad = geom['Wq'], geom['Hq'], geom['M'], geom['n_bands'], geom['Mc_pad']
    c_out_p = _round_up(out_c, 8)

    # --- dynamic per-sample kernel generation branch (tiny, plain JAX, vectorized) ---
    mh = _adaptive_pool_matrix(H, Hq, 3)
    mw = _adaptive_pool_matrix(W, Wq, 3)
    xg = xflat[:, :in_c].reshape(B, in_c, Hq, Wq).astype(jnp.float32)
    pooled = jnp.einsum('bchw,ih,jw->bcij', xg, mh, mw)                  # (B, in_c, 3, 3)
    h = jnp.einsum('bcij,oc->boij', pooled, p['kg1_w']) + p['kg1_b'][None, :, None, None]
    h = jax.nn.sigmoid(h)                                                # (B, R*R, 3, 3)
    kernels = grouped_conv1x1(h, p['kg2_w'], p['kg2_b'], region_num)     # (B, R*in_c*out_c, 3, 3)
    # TODO(synk): assumes kg2 output-channel order (region, out_c, in_c) as in DRConv2d's .view()
    wdyn = kernels.reshape(B, region_num, out_c, in_c, 3, 3)
    wdyn = jnp.pad(wdyn, ((0, 0), (0, 0), (0, c_out_p - out_c), (0, 0), (0, 0), (0, 0)))
    wdyn = wdyn.reshape(B, region_num * c_out_p, in_c, 3, 3)

    # guide-conv weights fused onto the dynamic kernels' output-channel axis
    wg = jnp.broadcast_to(p['guide_w'][None], (B, region_num, in_c, 3, 3))
    wall = jnp.concatenate([wdyn, wg], axis=1)                           # (B, Ncat, in_c, 3, 3)
    # K-major layout matching the in-kernel im2col ordering: K = (kh, kw, cin_p)
    wall = jnp.transpose(wall, (0, 1, 3, 4, 2))
    wall = jnp.pad(wall, ((0, 0), (0, 0), (0, 0), (0, 0), (0, cin_p - in_c)))
    ncat = region_num * c_out_p + region_num
    wcat = wall.reshape(B, ncat, 9 * cin_p).astype(jnp.bfloat16)

    bguide = p['guide_b'].reshape(region_num, 1)

    # BatchNorm folded to scale/shift (inference mode, running stats); pad channels -> exact zeros
    # TODO(synk): training-mode BatchNorm (per-batch statistics) not implemented; using running stats.
    inv_std = p['bn_gamma'] / jnp.sqrt(p['bn_var'] + 1e-5)
    scale = jnp.pad(inv_std, (0, c_out_p - out_c)).reshape(c_out_p, 1)
    shift = jnp.pad(p['bn_beta'] - p['bn_mean'] * inv_std, (0, c_out_p - out_c)).reshape(c_out_p, 1)

    mask = _valid_mask(H, W, geom)
    xdma = _pad_flat_for_dma(xflat, geom)                                # cheap contiguous pads only

    tap_offsets = tuple(kh * Wq + kw for kh in range(3) for kw in range(3))
    est = _vmem_estimate(cin_p, ncat, c_out_p, region_num, M, Mc_pad)
    vmem_limit = int(min(max(1.5 * est + (8 << 20), 32 << 20), 60 << 20))  # v7x-safe

    return drconv_bn_relu_pallas(
        xdma, wcat, bguide, scale, shift, mask,
        region_num=region_num, c_out_p=c_out_p, m_out=M, mc_pad=Mc_pad,
        n_bands=n_bands, tap_offsets=tap_offsets, vmem_limit=vmem_limit)


def dr_double_conv_forward(x, params1, params2, *, region_num, mid_c, out_c):
    """DRDoubleConv.forward: DRConv->BN->ReLU->DRConv->BN->ReLU; returns (res, guide_features)."""
    B, in_c, H, W = x.shape
    cin_p1, mid_p, out_p = _round_up(in_c, 8), _round_up(mid_c, 8), _round_up(out_c, 8)
    per_lane = max(_per_lane_bytes(cin_p1, mid_p, region_num),
                   _per_lane_bytes(mid_p, out_p, region_num))
    geom = _band_geometry(H, W, per_lane)

    xflat = _to_padded_flat(x, geom, cin_p1)
    y1, g1 = drconv_bn_relu_layer(xflat, params1, geom, region_num=region_num,
                                  in_c=in_c, out_c=mid_c, H=H, W=W)
    # y1 is already the next layer's padded band-flat bf16 input (halo zeroed, channels padded)
    y2, g2 = drconv_bn_relu_layer(y1, params2, geom, region_num=region_num,
                                  in_c=mid_c, out_c=out_c, H=H, W=W)

    Hq, Wq = geom['Hq'], geom['Wq']

    def crop(flat, nc):
        return flat.reshape(B, -1, Hq, Wq)[:, :nc, 1:H + 1, 1:W + 1]

    res = crop(y2, out_c).astype(jnp.float32)
    guide_features = []
    if DRCONV_POSITION_[0]:
        guide_features.append(crop(g1, region_num))
    if DRCONV_POSITION_[1]:
        guide_features.append(crop(g2, region_num))
    return res, guide_features


# ----------------------------------------------------------------------------------------------
# Deterministic parameter init (shapes follow DRConv2d / BatchNorm2d __init__)
# ----------------------------------------------------------------------------------------------
def init_drconv_bn_params(key, in_c, out_c, R):
    ks = jax.random.split(key, 8)
    n = lambda k, shape, s=0.1: s * jax.random.normal(k, shape, jnp.float32)
    return dict(
        kg1_w=n(ks[0], (R * R, in_c)),                 # Conv2d(in_c, R*R, 1)
        kg1_b=n(ks[1], (R * R,)),
        kg2_w=n(ks[2], (R * in_c * out_c, R)),         # Conv2d(R*R, R*in_c*out_c, 1, groups=R)
        kg2_b=n(ks[3], (R * in_c * out_c,)),
        guide_w=n(ks[4], (R, in_c, 3, 3)),             # Conv2d(in_c, R, 3, padding=1)
        guide_b=n(ks[5], (R,)),
        bn_gamma=1.0 + n(ks[6], (out_c,)),             # BatchNorm2d(out_c)
        bn_beta=n(ks[7], (out_c,)),
        bn_mean=jnp.zeros((out_c,), jnp.float32),
        bn_var=jnp.ones((out_c,), jnp.float32),
    )


if __name__ == "__main__":
    B, C_in, H, W = 2, 4, 16, 16
    C_mid = C_out = 8

    key = jax.random.PRNGKey(0)
    kx, k1, k2 = jax.random.split(key, 3)
    x = jax.random.normal(kx, (B, C_in, H, W), jnp.float32)

    params1 = init_drconv_bn_params(k1, C_in, C_mid, REGION_NUM_)
    params2 = init_drconv_bn_params(k2, C_mid, C_out, REGION_NUM_)

    fwd = jax.jit(functools.partial(dr_double_conv_forward,
                                    region_num=REGION_NUM_, mid_c=C_mid, out_c=C_out))
    res, guide_features = fwd(x, params1, params2)

    jax.block_until_ready(res)
    for g in guide_features:
        jax.block_until_ready(g)

    assert res.shape == (B, C_out, H, W)
    assert all(g.shape == (B, REGION_NUM_, H, W) for g in guide_features)
    print("KERNEL_OK")
</pallas_src>

<mosaic_0001>
module attributes {stable_mosaic.version = 11 : i64} {
  func.func @_drconv_bn_relu_kernel(%arg0: i32, %arg1: i32, %arg2: memref<2x8x896xbf16, #tpu.memory_space<any>>, %arg3: memref<1x72x72xbf16, #tpu.memory_space<vmem>>, %arg4: memref<8x1xf32, #tpu.memory_space<vmem>>, %arg5: memref<8x1xf32, #tpu.memory_space<vmem>>, %arg6: memref<8x1xf32, #tpu.memory_space<vmem>>, %arg7: memref<1x1x768xf32, #tpu.memory_space<vmem>>, %arg8: memref<1x8x768xbf16, #tpu.memory_space<vmem>>, %arg9: memref<1x8x768xf32, #tpu.memory_space<vmem>>, %arg10: memref<2x8x896xbf16, #tpu.memory_space<vmem>>, %arg11: memref<2x!tpu.dma_semaphore, #tpu.memory_space<semaphore_mem>>) attributes {dimension_semantics = [#tpu.dimension_semantics<parallel>, #tpu.dimension_semantics<arbitrary>], iteration_bounds = array<i64: 2, 1>, scalar_prefetch = 0 : i64, scratch_operands = 2 : i64, tpu.core_type = #tpu.core_type<tc>, window_params = [{}, {transform_indices = @transform_1, window_bounds = array<i64: 1, 72, 72>}, {pipeline_mode = #tpu.pipeline_mode<synchronous>, transform_indices = @transform_2, window_bounds = array<i64: 8, 1>}, {pipeline_mode = #tpu.pipeline_mode<synchronous>, transform_indices = @transform_3, window_bounds = array<i64: 8, 1>}, {pipeline_mode = #tpu.pipeline_mode<synchronous>, transform_indices = @transform_4, window_bounds = array<i64: 8, 1>}, {transform_indices = @transform_5, window_bounds = array<i64: 1, 1, 768>}, {transform_indices = @transform_6, window_bounds = array<i64: 1, 8, 768>}, {transform_indices = @transform_7, window_bounds = array<i64: 1, 8, 768>}]} {
    %c1_i32 = arith.constant 1 : i32
    %0 = arith.andi %arg1, %c1_i32 : i32
    %c0_i32 = arith.constant 0 : i32
    %1 = arith.cmpi eq, %arg1, %c0_i32 : i32
    %2 = arith.extui %1 : i1 to i32
    %c0_i32_0 = arith.constant 0 : i32
    %3 = arith.cmpi ne, %2, %c0_i32_0 : i32
    scf.if %3 {
      %c768_i32_39 = arith.constant 768 : i32
      %137 = arith.muli %arg1, %c768_i32_39 : i32
      %138 = tpu.assume_multiple %137, 128 : i32
      %c0_i32_40 = arith.constant 0 : i32
      %c0_i32_41 = arith.constant 0 : i32
      %c0_i32_42 = arith.constant 0 : i32
      %139 = tpu.memref_slice %arg2[%arg0, %c0_i32_42, %138] : memref<2x8x896xbf16, #tpu.memory_space<any>> -> memref<1x8x896xbf16, #tpu.memory_space<any>>
      %140 = tpu.memref_squeeze %139 : memref<1x8x896xbf16, #tpu.memory_space<any>> -> memref<8x896xbf16, #tpu.memory_space<any>>
      %c0_i32_43 = arith.constant 0 : i32
      %c0_i32_44 = arith.constant 0 : i32
      %141 = tpu.memref_slice %arg10[%c0_i32_40, %c0_i32_43, %c0_i32_44] : memref<2x8x896xbf16, #tpu.memory_space<vmem>> -> memref<1x8x896xbf16, #tpu.memory_space<vmem>>
      %142 = tpu.memref_squeeze %141 : memref<1x8x896xbf16, #tpu.memory_space<vmem>> -> memref<8x896xbf16, #tpu.memory_space<vmem>>
      %143 = tpu.memref_slice %arg11[%c0_i32_41] : memref<2x!tpu.dma_semaphore, #tpu.memory_space<semaphore_mem>> -> memref<1x!tpu.dma_semaphore, #tpu.memory_space<semaphore_mem>>
      %144 = tpu.memref_squeeze %143 : memref<1x!tpu.dma_semaphore, #tpu.memory_space<semaphore_mem>> -> memref<!tpu.dma_semaphore, #tpu.memory_space<semaphore_mem>>
      tpu.enqueue_dma source(%140 : memref<8x896xbf16, #tpu.memory_space<any>>) target(%142 : memref<8x896xbf16, #tpu.memory_space<vmem>>) target_semaphore(%144 : memref<!tpu.dma_semaphore, #tpu.memory_space<semaphore_mem>>)
    } else {
    }
    %c768_i32 = arith.constant 768 : i32
    %4 = arith.muli %arg1, %c768_i32 : i32
    %5 = tpu.assume_multiple %4, 128 : i32
    %c0_i32_1 = arith.constant 0 : i32
    %6 = tpu.memref_slice %arg2[%arg0, %c0_i32_1, %5] : memref<2x8x896xbf16, #tpu.memory_space<any>> -> memref<1x8x896xbf16, #tpu.memory_space<any>>
    %7 = tpu.memref_squeeze %6 : memref<1x8x896xbf16, #tpu.memory_space<any>> -> memref<8x896xbf16, #tpu.memory_space<any>>
    %c0_i32_2 = arith.constant 0 : i32
    %c0_i32_3 = arith.constant 0 : i32
    %8 = tpu.memref_slice %arg10[%0, %c0_i32_2, %c0_i32_3] : memref<2x8x896xbf16, #tpu.memory_space<vmem>> -> memref<1x8x896xbf16, #tpu.memory_space<vmem>>
    %9 = tpu.memref_squeeze %8 : memref<1x8x896xbf16, #tpu.memory_space<vmem>> -> memref<8x896xbf16, #tpu.memory_space<vmem>>
    %10 = tpu.memref_slice %arg11[%0] : memref<2x!tpu.dma_semaphore, #tpu.memory_space<semaphore_mem>> -> memref<1x!tpu.dma_semaphore, #tpu.memory_space<semaphore_mem>>
    %11 = tpu.memref_squeeze %10 : memref<1x!tpu.dma_semaphore, #tpu.memory_space<semaphore_mem>> -> memref<!tpu.dma_semaphore, #tpu.memory_space<semaphore_mem>>
    tpu.wait_dma2 semaphore(%11 : memref<!tpu.dma_semaphore, #tpu.memory_space<semaphore_mem>>) src(%7 : memref<8x896xbf16, #tpu.memory_space<any>>) dst(%9 : memref<8x896xbf16, #tpu.memory_space<vmem>>)
    %c1_i32_4 = arith.constant 1 : i32
    %12 = arith.addi %arg1, %c1_i32_4 : i32
    %c1_i32_5 = arith.constant 1 : i32
    %13 = arith.cmpi slt, %12, %c1_i32_5 : i32
    %14 = arith.extui %13 : i1 to i32
    %c0_i32_6 = arith.constant 0 : i32
    %15 = arith.cmpi ne, %14, %c0_i32_6 : i32
    scf.if %15 {
      %c1_i32_39 = arith.constant 1 : i32
      %137 = arith.addi %arg1, %c1_i32_39 : i32
      %c1_i32_40 = arith.constant 1 : i32
      %138 = arith.subi %c1_i32_40, %0 : i32
      %c768_i32_41 = arith.constant 768 : i32
      %139 = arith.muli %137, %c768_i32_41 : i32
      %140 = tpu.assume_multiple %139, 128 : i32
      %c0_i32_42 = arith.constant 0 : i32
      %141 = tpu.memref_slice %arg2[%arg0, %c0_i32_42, %140] : memref<2x8x896xbf16, #tpu.memory_space<any>> -> memref<1x8x896xbf16, #tpu.memory_space<any>>
      %142 = tpu.memref_squeeze %141 : memref<1x8x896xbf16, #tpu.memory_space<any>> -> memref<8x896xbf16, #tpu.memory_space<any>>
      %c0_i32_43 = arith.constant 0 : i32
      %c0_i32_44 = arith.constant 0 : i32
      %143 = tpu.memref_slice %arg10[%138, %c0_i32_43, %c0_i32_44] : memref<2x8x896xbf16, #tpu.memory_space<vmem>> -> memref<1x8x896xbf16, #tpu.memory_space<vmem>>
      %144 = tpu.memref_squeeze %143 : memref<1x8x896xbf16, #tpu.memory_space<vmem>> -> memref<8x896xbf16, #tpu.memory_space<vmem>>
      %145 = tpu.memref_slice %arg11[%138] : memref<2x!tpu.dma_semaphore, #tpu.memory_space<semaphore_mem>> -> memref<1x!tpu.dma_semaphore, #tpu.memory_space<semaphore_mem>>
      %146 = tpu.memref_squeeze %145 : memref<1x!tpu.dma_semaphore, #tpu.memory_space<semaphore_mem>> -> memref<!tpu.dma_semaphore, #tpu.memory_space<semaphore_mem>>
      tpu.enqueue_dma source(%142 : memref<8x896xbf16, #tpu.memory_space<any>>) target(%144 : memref<8x896xbf16, #tpu.memory_space<vmem>>) target_semaphore(%146 : memref<!tpu.dma_semaphore, #tpu.memory_space<semaphore_mem>>)
    } else {
    }
    %16 = arith.index_cast %0 : i32 to index
    %c0 = arith.constant 0 : index
    %c0_7 = arith.constant 0 : index
    %17 = vector.load %arg10[%16, %c0, %c0_7] : memref<2x8x896xbf16, #tpu.memory_space<vmem>>, vector<1x8x896xbf16>
    %18 = vector.shape_cast %17 : vector<1x8x896xbf16> to vector<8x896xbf16>
    %19 = vector.extract_strided_slice %18 {offsets = [0, 0], sizes = [8, 768], strides = [1, 1]} : vector<8x896xbf16> to vector<8x768xbf16>
    %20 = vector.extract_strided_slice %18 {offsets = [0, 1], sizes = [8, 768], strides = [1, 1]} : vector<8x896xbf16> to vector<8x768xbf16>
    %21 = vector.extract_strided_slice %18 {offsets = [0, 2], sizes = [8, 768], strides = [1, 1]} : vector<8x896xbf16> to vector<8x768xbf16>
    %22 = vector.extract_strided_slice %18 {offsets = [0, 24], sizes = [8, 768], strides = [1, 1]} : vector<8x896xbf16> to vector<8x768xbf16>
    %23 = vector.extract_strided_slice %18 {offsets = [0, 25], sizes = [8, 768], strides = [1, 1]} : vector<8x896xbf16> to vector<8x768xbf16>
    %24 = vector.extract_strided_slice %18 {offsets = [0, 26], sizes = [8, 768], strides = [1, 1]} : vector<8x896xbf16> to vector<8x768xbf16>
    %25 = vector.extract_strided_slice %18 {offsets = [0, 48], sizes = [8, 768], strides = [1, 1]} : vector<8x896xbf16> to vector<8x768xbf16>
    %26 = vector.extract_strided_slice %18 {offsets = [0, 49], sizes = [8, 768], strides = [1, 1]} : vector<8x896xbf16> to vector<8x768xbf16>
    %27 = vector.extract_strided_slice %18 {offsets = [0, 50], sizes = [8, 768], strides = [1, 1]} : vector<8x896xbf16> to vector<8x768xbf16>
    %28 = tpu.concatenate %19, %20, %21, %22, %23, %24, %25, %26, %27 in 0 : vector<8x768xbf16>, vector<8x768xbf16>, vector<8x768xbf16>, vector<8x768xbf16>, vector<8x768xbf16>, vector<8x768xbf16>, vector<8x768xbf16>, vector<8x768xbf16>, vector<8x768xbf16> -> vector<72x768xbf16>
    %c0_8 = arith.constant 0 : index
    %c0_9 = arith.constant 0 : index
    %c0_10 = arith.constant 0 : index
    %29 = vector.load %arg3[%c0_8, %c0_9, %c0_10] : memref<1x72x72xbf16, #tpu.memory_space<vmem>>, vector<1x72x72xbf16>
    %30 = vector.shape_cast %29 : vector<1x72x72xbf16> to vector<72x72xbf16>
    %cst = arith.constant dense<0.000000e+00> : vector<72x768xf32>
    %31 = tpu.matmul %30, %28, %cst {dimension_numbers = #tpu.dot_dimension_numbers<[1], [0], [0], [1], [0, 0, 1, 1], [], []>} : vector<72x72xbf16>, vector<72x768xbf16>, vector<72x768xf32> -> vector<72x768xf32>
    %32 = vector.extract_strided_slice %31 {offsets = [0, 0], sizes = [64, 768], strides = [1, 1]} : vector<72x768xf32> to vector<64x768xf32>
    %33 = vector.extract_strided_slice %31 {offsets = [64, 0], sizes = [8, 768], strides = [1, 1]} : vector<72x768xf32> to vector<8x768xf32>
    %c0_11 = arith.constant 0 : index
    %c0_12 = arith.constant 0 : index
    %34 = vector.load %arg4[%c0_11, %c0_12] : memref<8x1xf32, #tpu.memory_space<vmem>>, vector<8x1xf32>
    %35 = vector.broadcast %34 : vector<8x1xf32> to vector<8x768xf32>
    %36 = arith.addf %33, %35 : vector<8x768xf32>
    %c0_13 = arith.constant 0 : index
    %c0_14 = arith.constant 0 : index
    %c0_15 = arith.constant 0 : index
    %37 = vector.load %arg9[%c0_13, %c0_14, %c0_15] : memref<1x8x768xf32, #tpu.memory_space<vmem>>, vector<1x8x768xf32>
    %38 = vector.shape_cast %37 : vector<1x8x768xf32> to vector<8x768xf32>
    %39 = vector.shape_cast %36 : vector<8x768xf32> to vector<1x8x768xf32>
    tpu.vector_store %arg9[%c0_13, %c0_14, %c0_15], %39 {strides = array<i32>} : memref<1x8x768xf32, #tpu.memory_space<vmem>>, vector<1x8x768xf32>,
    %cst_16 = arith.constant dense<0xFF800000> : vector<768xf32>
    %40 = vector.multi_reduction <maximumf>, %36, %cst_16 [0] : vector<8x768xf32> to vector<768xf32>
    %41 = vector.shape_cast %40 : vector<768xf32> to vector<1x768xf32>
    %42 = tpu.iota {dimensions = array<i32: 0>} : vector<8x768xi32>
    %43 = vector.broadcast %41 : vector<1x768xf32> to vector<8x768xf32>
    %44 = arith.cmpf oeq, %36, %43 : vector<8x768xf32>
    %c8_i32 = arith.constant 8 : i32
    %45 = vector.broadcast %c8_i32 : i32 to vector<8x768xi32>
    %46 = arith.select %44, %42, %45 : vector<8x768xi1>, vector<8x768xi32>
    %cst_17 = arith.constant dense<2147483647> : vector<768xi32>
    %47 = vector.multi_reduction <minsi>, %46, %cst_17 [0] : vector<8x768xi32> to vector<768xi32>
    %48 = vector.shape_cast %47 : vector<768xi32> to vector<1x768xi32>
    %49 = vector.shape_cast %32 : vector<64x768xf32> to vector<8x8x768xf32>
    %c0_i32_18 = arith.constant 0 : i32
    %50 = vector.broadcast %c0_i32_18 : i32 to vector<1x768xi32>
    %51 = arith.cmpi eq, %48, %50 : vector<1x768xi32>
    %52 = vector.extract_strided_slice %49 {offsets = [0, 0, 0], sizes = [1, 8, 768], strides = [1, 1, 1]} : vector<8x8x768xf32> to vector<1x8x768xf32>
    %53 = vector.shape_cast %52 : vector<1x8x768xf32> to vector<8x768xf32>
    %cst_19 = arith.constant 0.000000e+00 : f32
    %54 = vector.shape_cast %51 : vector<1x768xi1> to vector<1x768xi1>
    %55 = vector.broadcast %54 : vector<1x768xi1> to vector<8x768xi1>
    %56 = vector.broadcast %cst_19 : f32 to vector<8x768xf32>
    %57 = arith.select %55, %53, %56 : vector<8x768xi1>, vector<8x768xf32>
    %c1_i32_20 = arith.constant 1 : i32
    %58 = vector.broadcast %c1_i32_20 : i32 to vector<1x768xi32>
    %59 = arith.cmpi eq, %48, %58 : vector<1x768xi32>
    %60 = vector.extract_strided_slice %49 {offsets = [1, 0, 0], sizes = [1, 8, 768], strides = [1, 1, 1]} : vector<8x8x768xf32> to vector<1x8x768xf32>
    %61 = vector.shape_cast %60 : vector<1x8x768xf32> to vector<8x768xf32>
    %cst_21 = arith.constant 0.000000e+00 : f32
    %62 = vector.shape_cast %59 : vector<1x768xi1> to vector<1x768xi1>
    %63 = vector.broadcast %62 : vector<1x768xi1> to vector<8x768xi1>
    %64 = vector.broadcast %cst_21 : f32 to vector<8x768xf32>
    %65 = arith.select %63, %61, %64 : vector<8x768xi1>, vector<8x768xf32>
    %66 = arith.addf %57, %65 : vector<8x768xf32>
    %c2_i32 = arith.constant 2 : i32
    %67 = vector.broadcast %c2_i32 : i32 to vector<1x768xi32>
    %68 = arith.cmpi eq, %48, %67 : vector<1x768xi32>
    %69 = vector.extract_strided_slice %49 {offsets = [2, 0, 0], sizes = [1, 8, 768], strides = [1, 1, 1]} : vector<8x8x768xf32> to vector<1x8x768xf32>
    %70 = vector.shape_cast %69 : vector<1x8x768xf32> to vector<8x768xf32>
    %cst_22 = arith.constant 0.000000e+00 : f32
    %71 = vector.shape_cast %68 : vector<1x768xi1> to vector<1x768xi1>
    %72 = vector.broadcast %71 : vector<1x768xi1> to vector<8x768xi1>
    %73 = vector.broadcast %cst_22 : f32 to vector<8x768xf32>
    %74 = arith.select %72, %70, %73 : vector<8x768xi1>, vector<8x768xf32>
    %75 = arith.addf %66, %74 : vector<8x768xf32>
    %c3_i32 = arith.constant 3 : i32
    %76 = vector.broadcast %c3_i32 : i32 to vector<1x768xi32>
    %77 = arith.cmpi eq, %48, %76 : vector<1x768xi32>
    %78 = vector.extract_strided_slice %49 {offsets = [3, 0, 0], sizes = [1, 8, 768], strides = [1, 1, 1]} : vector<8x8x768xf32> to vector<1x8x768xf32>
    %79 = vector.shape_cast %78 : vector<1x8x768xf32> to vector<8x768xf32>
    %cst_23 = arith.constant 0.000000e+00 : f32
    %80 = vector.shape_cast %77 : vector<1x768xi1> to vector<1x768xi1>
    %81 = vector.broadcast %80 : vector<1x768xi1> to vector<8x768xi1>
    %82 = vector.broadcast %cst_23 : f32 to vector<8x768xf32>
    %83 = arith.select %81, %79, %82 : vector<8x768xi1>, vector<8x768xf32>
    %84 = arith.addf %75, %83 : vector<8x768xf32>
    %c4_i32 = arith.constant 4 : i32
    %85 = vector.broadcast %c4_i32 : i32 to vector<1x768xi32>
    %86 = arith.cmpi eq, %48, %85 : vector<1x768xi32>
    %87 = vector.extract_strided_slice %49 {offsets = [4, 0, 0], sizes = [1, 8, 768], strides = [1, 1, 1]} : vector<8x8x768xf32> to vector<1x8x768xf32>
    %88 = vector.shape_cast %87 : vector<1x8x768xf32> to vector<8x768xf32>
    %cst_24 = arith.constant 0.000000e+00 : f32
    %89 = vector.shape_cast %86 : vector<1x768xi1> to vector<1x768xi1>
    %90 = vector.broadcast %89 : vector<1x768xi1> to vector<8x768xi1>
    %91 = vector.broadcast %cst_24 : f32 to vector<8x768xf32>
    %92 = arith.select %90, %88, %91 : vector<8x768xi1>, vector<8x768xf32>
    %93 = arith.addf %84, %92 : vector<8x768xf32>
    %c5_i32 = arith.constant 5 : i32
    %94 = vector.broadcast %c5_i32 : i32 to vector<1x768xi32>
    %95 = arith.cmpi eq, %48, %94 : vector<1x768xi32>
    %96 = vector.extract_strided_slice %49 {offsets = [5, 0, 0], sizes = [1, 8, 768], strides = [1, 1, 1]} : vector<8x8x768xf32> to vector<1x8x768xf32>
    %97 = vector.shape_cast %96 : vector<1x8x768xf32> to vector<8x768xf32>
    %cst_25 = arith.constant 0.000000e+00 : f32
    %98 = vector.shape_cast %95 : vector<1x768xi1> to vector<1x768xi1>
    %99 = vector.broadcast %98 : vector<1x768xi1> to vector<8x768xi1>
    %100 = vector.broadcast %cst_25 : f32 to vector<8x768xf32>
    %101 = arith.select %99, %97, %100 : vector<8x768xi1>, vector<8x768xf32>
    %102 = arith.addf %93, %101 : vector<8x768xf32>
    %c6_i32 = arith.constant 6 : i32
    %103 = vector.broadcast %c6_i32 : i32 to vector<1x768xi32>
    %104 = arith.cmpi eq, %48, %103 : vector<1x768xi32>
    %105 = vector.extract_strided_slice %49 {offsets = [6, 0, 0], sizes = [1, 8, 768], strides = [1, 1, 1]} : vector<8x8x768xf32> to vector<1x8x768xf32>
    %106 = vector.shape_cast %105 : vector<1x8x768xf32> to vector<8x768xf32>
    %cst_26 = arith.constant 0.000000e+00 : f32
    %107 = vector.shape_cast %104 : vector<1x768xi1> to vector<1x768xi1>
    %108 = vector.broadcast %107 : vector<1x768xi1> to vector<8x768xi1>
    %109 = vector.broadcast %cst_26 : f32 to vector<8x768xf32>
    %110 = arith.select %108, %106, %109 : vector<8x768xi1>, vector<8x768xf32>
    %111 = arith.addf %102, %110 : vector<8x768xf32>
    %c7_i32 = arith.constant 7 : i32
    %112 = vector.broadcast %c7_i32 : i32 to vector<1x768xi32>
    %113 = arith.cmpi eq, %48, %112 : vector<1x768xi32>
    %114 = vector.extract_strided_slice %49 {offsets = [7, 0, 0], sizes = [1, 8, 768], strides = [1, 1, 1]} : vector<8x8x768xf32> to vector<1x8x768xf32>
    %115 = vector.shape_cast %114 : vector<1x8x768xf32> to vector<8x768xf32>
    %cst_27 = arith.constant 0.000000e+00 : f32
    %116 = vector.shape_cast %113 : vector<1x768xi1> to vector<1x768xi1>
    %117 = vector.broadcast %116 : vector<1x768xi1> to vector<8x768xi1>
    %118 = vector.broadcast %cst_27 : f32 to vector<8x768xf32>
    %119 = arith.select %117, %115, %118 : vector<8x768xi1>, vector<8x768xf32>
    %120 = arith.addf %111, %119 : vector<8x768xf32>
    %c0_28 = arith.constant 0 : index
    %c0_29 = arith.constant 0 : index
    %121 = vector.load %arg5[%c0_28, %c0_29] : memref<8x1xf32, #tpu.memory_space<vmem>>, vector<8x1xf32>
    %122 = vector.broadcast %121 : vector<8x1xf32> to vector<8x768xf32>
    %123 = arith.mulf %120, %122 : vector<8x768xf32>
    %c0_30 = arith.constant 0 : index
    %c0_31 = arith.constant 0 : index
    %124 = vector.load %arg6[%c0_30, %c0_31] : memref<8x1xf32, #tpu.memory_space<vmem>>, vector<8x1xf32>
    %125 = vector.broadcast %124 : vector<8x1xf32> to vector<8x768xf32>
    %126 = arith.addf %123, %125 : vector<8x768xf32>
    %cst_32 = arith.constant 0.000000e+00 : f32
    %127 = vector.broadcast %cst_32 : f32 to vector<8x768xf32>
    %128 = arith.maximumf %126, %127 : vector<8x768xf32>
    %c0_33 = arith.constant 0 : index
    %c0_34 = arith.constant 0 : index
    %c0_35 = arith.constant 0 : index
    %129 = vector.load %arg7[%c0_33, %c0_34, %c0_35] : memref<1x1x768xf32, #tpu.memory_space<vmem>>, vector<1x1x768xf32>
    %130 = vector.shape_cast %129 : vector<1x1x768xf32> to vector<1x768xf32>
    %131 = vector.broadcast %130 : vector<1x768xf32> to vector<8x768xf32>
    %132 = arith.mulf %128, %131 : vector<8x768xf32>
    %133 = arith.truncf %132 : vector<8x768xf32> to vector<8x768xbf16>
    %c0_36 = arith.constant 0 : index
    %c0_37 = arith.constant 0 : index
    %c0_38 = arith.constant 0 : index
    %134 = vector.load %arg8[%c0_36, %c0_37, %c0_38] : memref<1x8x768xbf16, #tpu.memory_space<vmem>>, vector<1x8x768xbf16>
    %135 = vector.shape_cast %134 : vector<1x8x768xbf16> to vector<8x768xbf16>
    %136 = vector.shape_cast %133 : vector<8x768xbf16> to vector<1x8x768xbf16>
    tpu.vector_store %arg8[%c0_36, %c0_37, %c0_38], %136 {strides = array<i32>} : memref<1x8x768xbf16, #tpu.memory_space<vmem>>, vector<1x8x768xbf16>,
    return
  }
  func.func @transform_1(%arg0: i32, %arg1: i32) -> (i32, i32, i32) {
    %c0_i32 = arith.constant 0 : i32
    %c0_i32_0 = arith.constant 0 : i32
    %c0_i32_1 = arith.constant 0 : i32
    return %arg0, %c0_i32, %c0_i32_0 : i32, i32, i32
  }
  func.func @transform_2(%arg0: i32, %arg1: i32) -> (i32, i32) {
    %c0_i32 = arith.constant 0 : i32
    %c0_i32_0 = arith.constant 0 : i32
    %c0_i32_1 = arith.constant 0 : i32
    return %c0_i32, %c0_i32_0 : i32, i32
  }
  func.func @transform_3(%arg0: i32, %arg1: i32) -> (i32, i32) {
    %c0_i32 = arith.constant 0 : i32
    %c0_i32_0 = arith.constant 0 : i32
    %c0_i32_1 = arith.constant 0 : i32
    return %c0_i32, %c0_i32_0 : i32, i32
  }
  func.func @transform_4(%arg0: i32, %arg1: i32) -> (i32, i32) {
    %c0_i32 = arith.constant 0 : i32
    %c0_i32_0 = arith.constant 0 : i32
    %c0_i32_1 = arith.constant 0 : i32
    return %c0_i32, %c0_i32_0 : i32, i32
  }
  func.func @transform_5(%arg0: i32, %arg1: i32) -> (i32, i32, i32) {
    %c0_i32 = arith.constant 0 : i32
    %c0_i32_0 = arith.constant 0 : i32
    %c0_i32_1 = arith.constant 0 : i32
    return %arg1, %c0_i32, %c0_i32_0 : i32, i32, i32
  }
  func.func @transform_6(%arg0: i32, %arg1: i32) -> (i32, i32, i32) {
    %c0_i32 = arith.constant 0 : i32
    %c0_i32_0 = arith.constant 0 : i32
    return %arg0, %c0_i32, %arg1 : i32, i32, i32
  }
  func.func @transform_7(%arg0: i32, %arg1: i32) -> (i32, i32, i32) {
    %c0_i32 = arith.constant 0 : i32
    %c0_i32_0 = arith.constant 0 : i32
    return %arg0, %c0_i32, %arg1 : i32, i32, i32
  }
}

</mosaic_0001>

<llo_original>
// kernel: dr_double_conv_forward.2
$region0: #{dr_double_conv_forward.2}
  #allocation0 [shape = 'u32[]', space=smem, size = 0x4, offset = 0x4, fixed_abs, tag = 'smem constant byte address 0x4 - core index']
  #allocation1 [shape = 'u32[144,128]{1,0:T(1,128)}', space=vmem, size = 0x12000, scoped, tag = 'internal scratch']
  #allocation2 [shape = 'bf16[2,8,896]{2,1,0:T(8,128)(2,1)}', space=vmem, size = 0x7000, scoped, tag = 'scratch operand']
  #allocation3 [shape = 's32[2]{0}', space=sflag, size = 0x8, scoped, tag = 'scratch operand']
  #allocation4 [shape = 's32[]', space=sflag, size = 0x4, offset = 0, fixed_abs, tag = 'sflag constant byte address 0x0 - dummy sync flag']
  #allocation5 [shape = 's32[]', space=sflag, size = 0x4, offset = 0, fixed_abs, tag = 'sflag constant byte address 0x0 - dummy sync flag']
  %s0 = inlined_call_operand.vmem [shape: bf16[2,8,896], index: 0, kind: input, shape index: {}]
  %s1 = inlined_call_operand.vmem [shape: bf16[2,72,72], index: 1, kind: input, shape index: {}]
  %s2 = inlined_call_operand.vmem [shape: f32[8,1], index: 2, kind: input, shape index: {}]
  %s3 = inlined_call_operand.vmem [shape: f32[8,1], index: 3, kind: input, shape index: {}]
  %s4 = inlined_call_operand.vmem [shape: f32[8,1], index: 4, kind: input, shape index: {}]
  %s5 = inlined_call_operand.vmem [shape: f32[1,1,768], index: 5, kind: input, shape index: {}]
  %s6 = inlined_call_operand.vmem [shape: bf16[2,8,768], index: 6, kind: output, shape index: {0}]
  %s7 = inlined_call_operand.vmem [shape: f32[2,8,768], index: 7, kind: output, shape index: {1}]
  %8 = xla_tuple %s6, %s7
  %s9 = sld [smem:[#allocation0]]
  $region143: #{dr_double_conv_forward.2} parent=0
    _
  %s11 = ssub.s32 1, %s9
  %s12 = scalar_select 0, %s11, %s9
  loop: start=0, step=1, limit=4
  $region2: #{dr_double_conv_forward.2} parent=0 // loop_pre_header
    _
  $region3: #{dr_double_conv_forward.2} parent=0 // loop_header
    %s14 = sphi 0, %s18
    %p15 = scmp.ge.s32.totalorder %s14, 4
    %s21 = sphi 0, %s33
    %s22 = sphi 0, %s29
    %s23 = sphi 0, %s21
    %s24 = sphi 0, %s22
    %s25 = sphi 0, %s23
    %s26 = sphi 0, %s24
    %s36 = sphi 0, %s38
    %s39 = sphi 0, %s36
    %s40 = sphi 0, %s39
    %s56 = sphi 0, %s40
    %s60 = sphi 0, %s60
    %s62 = sphi 0, %s60
    %s63 = sphi 0, %s62
    %s77 = sphi 0, %s63
    %s81 = sphi 0, %s81
    %s83 = sphi 0, %s81
    %s84 = sphi 0, %s83
    %s98 = sphi 0, %s84
    %s102 = sphi 0, %s102
    %s104 = sphi 0, %s102
    %s105 = sphi 0, %s104
    %s119 = sphi 0, %s105
    %s125 = sphi 0, %s127
    %s128 = sphi 0, %s125
    %s129 = sphi 0, %s128
    %s145 = sphi 0, %s129
    %s153 = sphi 0, %s155
    %s156 = sphi 0, %s153
    %s157 = sphi 0, %s156
    %s173 = sphi 0, %s157
    %s181 = sphi 0, %s183
    %s184 = sphi 0, %s181
    %s185 = sphi 0, %s184
    %s201 = sphi 0, %s185
  $region4: #{dr_double_conv_forward.2} parent=0 // loop_header_branch
    %17 = sbr.rel (%p15) target = $region8
  $region5: #{dr_double_conv_forward.2} parent=0 // loop_body
    %s19 = ssub.s32 %s14, 1
    %s20 = ssub.s32 %s14, 2
    %s27 = sadd.s32 1, %s22
    %p28 = scmp.ge.s32.totalorder %s27, 1
    %s29 = scalar_select %p28, 0, %s27
    %s30 = sadd.s32 1, %s21
    %s31 = scalar_select %p28, %s30, %s21
    %p32 = scmp.ge.s32.totalorder %s31, 2
    %s33 = scalar_select %p32, 0, %s31
    %s34 = ssub.s32 %s21, %s33
    %p35 = scmp.eq.s32.totalorder %s34, 0
    %s37 = sadd.s32 %s36, 1
    %s38 = scalar_select %p35, %s36, %s37
    %p41 = pneg %p35
    %p42 = scmp.eq.s32.totalorder %s14, 1
    %p43 = por %p41, %p42
    %p44 = scmp.ne.s32.totalorder %s36, %s39
    %p45 = scmp.eq.s32.totalorder %s14, 0
    %p46 = por %p44, %p45
    %p47 = scmp.ne.s32.totalorder %s36, %s39
    %p48 = scmp.eq.s32.totalorder %s19, 1
    %p49 = por %p47, %p48
    %p50 = scmp.ne.s32.totalorder %s39, %s40
    %p51 = scmp.eq.s32.totalorder %s19, 0
    %p52 = por %p50, %p51
    %p53 = scmp.ne.s32.totalorder %s39, %s40
    %p54 = scmp.eq.s32.totalorder %s20, 1
    %p55 = por %p53, %p54
    %p57 = scmp.ne.s32.totalorder %s40, %s56
    %p58 = scmp.eq.s32.totalorder %s20, 0
    %p59 = por %p57, %p58
    %s61 = sadd.s32 %s60, 1
    %p64 = scmp.eq.s32.totalorder %s14, 1
    %p65 = scmp.ne.s32.totalorder %s60, %s62
    %p66 = scmp.eq.s32.totalorder %s14, 0
    %p67 = por %p65, %p66
    %p68 = scmp.ne.s32.totalorder %s60, %s62
    %p69 = scmp.eq.s32.totalorder %s19, 1
    %p70 = por %p68, %p69
    %p71 = scmp.ne.s32.totalorder %s62, %s63
    %p72 = scmp.eq.s32.totalorder %s19, 0
    %p73 = por %p71, %p72
    %p74 = scmp.ne.s32.totalorder %s62, %s63
    %p75 = scmp.eq.s32.totalorder %s20, 1
    %p76 = por %p74, %p75
    %p78 = scmp.ne.s32.totalorder %s63, %s77
    %p79 = scmp.eq.s32.totalorder %s20, 0
    %p80 = por %p78, %p79
    %s82 = sadd.s32 %s81, 1
    %p85 = scmp.eq.s32.totalorder %s14, 1
    %p86 = scmp.ne.s32.totalorder %s81, %s83
    %p87 = scmp.eq.s32.totalorder %s14, 0
    %p88 = por %p86, %p87
    %p89 = scmp.ne.s32.totalorder %s81, %s83
    %p90 = scmp.eq.s32.totalorder %s19, 1
    %p91 = por %p89, %p90
    %p92 = scmp.ne.s32.totalorder %s83, %s84
    %p93 = scmp.eq.s32.totalorder %s19, 0
    %p94 = por %p92, %p93
    %p95 = scmp.ne.s32.totalorder %s83, %s84
    %p96 = scmp.eq.s32.totalorder %s20, 1
    %p97 = por %p95, %p96
    %p99 = scmp.ne.s32.totalorder %s84, %s98
    %p100 = scmp.eq.s32.totalorder %s20, 0
    %p101 = por %p99, %p100
    %s103 = sadd.s32 %s102, 1
    %p106 = scmp.eq.s32.totalorder %s14, 1
    %p107 = scmp.ne.s32.totalorder %s102, %s104
    %p108 = scmp.eq.s32.totalorder %s14, 0
    %p109 = por %p107, %p108
    %p110 = scmp.ne.s32.totalorder %s102, %s104
    %p111 = scmp.eq.s32.totalorder %s19, 1
    %p112 = por %p110, %p111
    %p113 = scmp.ne.s32.totalorder %s104, %s105
    %p114 = scmp.eq.s32.totalorder %s19, 0
    %p115 = por %p113, %p114
    %p116 = scmp.ne.s32.totalorder %s104, %s105
    %p117 = scmp.eq.s32.totalorder %s20, 1
    %p118 = por %p116, %p117
    %p120 = scmp.ne.s32.totalorder %s105, %s119
    %p121 = scmp.eq.s32.totalorder %s20, 0
    %p122 = por %p120, %p121
    %s123 = ssub.s32 %s22, %s29
    %p124 = scmp.eq.s32.totalorder %s123, 0
    %s126 = sadd.s32 %s125, 1
    %s127 = scalar_select %p124, %s125, %s126
    %p130 = pneg %p124
    %p131 = scmp.eq.s32.totalorder %s14, 1
    %p132 = por %p130, %p131
    %p133 = scmp.ne.s32.totalorder %s125, %s128
    %p134 = scmp.eq.s32.totalorder %s14, 0
    %p135 = por %p133, %p134
    %p136 = scmp.ne.s32.totalorder %s125, %s128
    %p137 = scmp.eq.s32.totalorder %s19, 1
    %p138 = por %p136, %p137
    %p139 = scmp.ne.s32.totalorder %s128, %s129
    %p140 = scmp.eq.s32.totalorder %s19, 0
    %p141 = por %p139, %p140
    %p142 = scmp.ne.s32.totalorder %s128, %s129
    %p143 = scmp.eq.s32.totalorder %s20, 1
    %p144 = por %p142, %p143
    %p146 = scmp.ne.s32.totalorder %s129, %s145
    %p147 = scmp.eq.s32.totalorder %s20, 0
    %p148 = por %p146, %p147
    %s149 = ssub.s32 %s21, %s33
    %s150 = ssub.s32 %s22, %s29
    %s151 = sor.u32 %s149, %s150
    %p152 = scmp.eq.s32.totalorder %s151, 0
    %s154 = sadd.s32 %s153, 1
    %s155 = scalar_select %p152, %s153, %s154
    %p158 = pneg %p152
    %p159 = scmp.eq.s32.totalorder %s14, 1
    %p160 = por %p158, %p159
    %p161 = scmp.ne.s32.totalorder %s153, %s156
    %p162 = scmp.eq.s32.totalorder %s14, 0
    %p163 = por %p161, %p162
    %p164 = scmp.ne.s32.totalorder %s153, %s156
    %p165 = scmp.eq.s32.totalorder %s19, 1
    %p166 = por %p164, %p165
    %p167 = scmp.ne.s32.totalorder %s156, %s157
    %p168 = scmp.eq.s32.totalorder %s19, 0
    %p169 = por %p167, %p168
    %p170 = scmp.ne.s32.totalorder %s156, %s157
    %p171 = scmp.eq.s32.totalorder %s20, 1
    %p172 = por %p170, %p171
    %p174 = scmp.ne.s32.totalorder %s157, %s173
    %p175 = scmp.eq.s32.totalorder %s20, 0
    %p176 = por %p174, %p175
    %s177 = ssub.s32 %s21, %s33
    %s178 = ssub.s32 %s22, %s29
    %s179 = sor.u32 %s177, %s178
    %p180 = scmp.eq.s32.totalorder %s179, 0
    %s182 = sadd.s32 %s181, 1
    %s183 = scalar_select %p180, %s181, %s182
    %p186 = pneg %p180
    %p187 = scmp.eq.s32.totalorder %s14, 1
    %p188 = por %p186, %p187
    %p189 = scmp.ne.s32.totalorder %s181, %s184
    %p190 = scmp.eq.s32.totalorder %s14, 0
    %p191 = por %p189, %p190
    %p192 = scmp.ne.s32.totalorder %s181, %s184
    %p193 = scmp.eq.s32.totalorder %s19, 1
    %p194 = por %p192, %p193
    %p195 = scmp.ne.s32.totalorder %s184, %s185
    %p196 = scmp.eq.s32.totalorder %s19, 0
    %p197 = por %p195, %p196
    %p198 = scmp.ne.s32.totalorder %s184, %s185
    %p199 = scmp.eq.s32.totalorder %s20, 1
    %p200 = por %p198, %p199
    %p202 = scmp.ne.s32.totalorder %s185, %s201
    %p203 = scmp.eq.s32.totalorder %s20, 0
    %p204 = por %p202, %p203
    %p205 = scmp.le.s32.totalorder 1, %s14
    %p206 = scmp.lt.s32.totalorder %s14, 3
    %p207 = pnand %p205, %p206
    %p208 = pneg %p207
    // Predicated region
    $region9: #{dr_double_conv_forward.2} parent=5 // pred_check
      _
    $region10: #{dr_double_conv_forward.2} parent=5 // pred_check_branch
      %210 = sbr.rel (%p207) target = $region12
    $region11: #{dr_double_conv_forward.2} parent=5 // pred_region
      %s211 = ssub.s32 %s14, 1
      // Predicated region
      $region13: #{dr_double_conv_forward.2} parent=11 // pred_check
        %p212 = pneg %p73
      $region14: #{dr_double_conv_forward.2} parent=11 // pred_check_branch
        %214 = sbr.rel (%p212) target = $region16
      $region15: #{dr_double_conv_forward.2} parent=11 // pred_region
        _
      $region16: #{dr_double_conv_forward.2} parent=11 // pred_fallthru
        _
      // Predicated region
      $region17: #{dr_double_conv_forward.2} parent=11 // pred_check
        %p215 = pneg %p94
      $region18: #{dr_double_conv_forward.2} parent=11 // pred_check_branch
        %217 = sbr.rel (%p215) target = $region20
      $region19: #{dr_double_conv_forward.2} parent=11 // pred_region
        _
      $region20: #{dr_double_conv_forward.2} parent=11 // pred_fallthru
        _
      // Predicated region
      $region21: #{dr_double_conv_forward.2} parent=11 // pred_check
        %p218 = pneg %p115
      $region22: #{dr_double_conv_forward.2} parent=11 // pred_check_branch
        %220 = sbr.rel (%p218) target = $region24
      $region23: #{dr_double_conv_forward.2} parent=11 // pred_region
        _
      $region24: #{dr_double_conv_forward.2} parent=11 // pred_fallthru
        _
      // Predicated region
      $region25: #{dr_double_conv_forward.2} parent=11 // pred_check
        %p221 = pneg %p141
      $region26: #{dr_double_conv_forward.2} parent=11 // pred_check_branch
        %223 = sbr.rel (%p221) target = $region28
      $region27: #{dr_double_conv_forward.2} parent=11 // pred_region
        %p224 = scmp.lt.s32.totalorder %s24, 0
        %s225 = scalar_select %p224, %s24, 0
        %s226 = smul.addr %s225, 6
        %s227 = scalar_lea.vmem %s5, %s226
      $region28: #{dr_double_conv_forward.2} parent=11 // pred_fallthru
        _
    $region12: #{dr_double_conv_forward.2} parent=5 // pred_fallthru
      _
    %p228 = scmp.lt.s32.totalorder %s14, 2
    // Predicated region
    $region29: #{dr_double_conv_forward.2} parent=5 // pred_check
      %p229 = pneg %p228
    $region30: #{dr_double_conv_forward.2} parent=5 // pred_check_branch
      %231 = sbr.rel (%p229) target = $region32
    $region31: #{dr_double_conv_forward.2} parent=5 // pred_region
      // Predicated region
      $region33: #{dr_double_conv_forward.2} parent=31 // pred_check
        %p232 = pneg %p46
      $region34: #{dr_double_conv_forward.2} parent=31 // pred_check_branch
        %234 = sbr.rel (%p232) target = $region36
      $region35: #{dr_double_conv_forward.2} parent=31 // pred_region
        %p235 = scmp.lt.s32.totalorder %s21, 1
        %s236 = scalar_select %p235, %s21, 1
        %s237 = smul.addr %s236, 9
        %s238 = smul.addr %s237, 4
        %s239 = scalar_lea.vmem %s1, %s238
      $region36: #{dr_double_conv_forward.2} parent=31 // pred_fallthru
        _
    $region32: #{dr_double_conv_forward.2} parent=5 // pred_fallthru
      _
    %p240 = scmp.le.s32.totalorder 1, %s14
    %p241 = scmp.lt.s32.totalorder %s14, 3
    %p242 = pnand %p240, %p241
    %p243 = pneg %p242
    // Predicated region
    $region37: #{dr_double_conv_forward.2} parent=5 // pred_check
      _
    $region38: #{dr_double_conv_forward.2} parent=5 // pred_check_branch
      %245 = sbr.rel (%p242) target = $region40
    $region39: #{dr_double_conv_forward.2} parent=5 // pred_region
      %s246 = ssub.s32 %s14, 1
      %p247 = scmp.lt.s32.totalorder %s23, 1
      %s248 = scalar_select %p247, %s23, 1
      %s249 = smul.addr %s248, 9
      %s250 = smul.addr %s249, 4
      %s251 = scalar_lea.vmem %s1, %s250
      %p252 = pneg %p52
      %p253 = pneg %p49
      %p254 = pneg %p73
      %p255 = pneg %p70
      %p256 = pneg %p94
      %p257 = pneg %p91
      %p258 = pneg %p115
      %p259 = pneg %p112
      %p260 = scmp.lt.s32.totalorder %s24, 0
      %s261 = scalar_select %p260, %s24, 0
      %s262 = smul.addr %s261, 6
      %s263 = scalar_lea.vmem %s5, %s262
      %p264 = pneg %p141
      %p265 = pneg %p138
      %p266 = pneg %p169
      %p267 = pneg %p166
      %s268 = smul.u32 6, %s24
      %p269 = scmp.lt.s32.totalorder %s23, 1
      %s270 = scalar_select %p269, %s23, 1
      %p271 = scmp.lt.s32.totalorder %s268, 5
      %s272 = scalar_select %p271, %s268, 5
      %s273 = smul.addr %s270, 6
      %s274 = sadd.s32 %s272, %s273
      %s275 = smul.addr %s274, 4
      %s276 = scalar_lea.vmem %s6, %s275
      %p277 = pneg %p197
      %p278 = pneg %p194
      %s279 = smul.u32 6, %s24
      %p280 = scmp.lt.s32.totalorder %s23, 1
      %s281 = scalar_select %p280, %s23, 1
      %p282 = scmp.lt.s32.totalorder %s279, 5
      %s283 = scalar_select %p282, %s279, 5
      %s284 = smul.addr %s281, 6
      %s285 = sadd.s32 %s283, %s284
      %s286 = smul.addr %s285, 8
      %s287 = scalar_lea.vmem %s7, %s286
      %p288 = scmp.lt.s32.totalorder %s23, 1
      %s289 = scalar_select %p288, %s23, 1
      %s290 = smul.addr %s289, 9
      %s291 = smul.addr %s290, 4
      %s292 = scalar_lea.vmem %s1, %s291
      %p293 = scmp.lt.s32.totalorder %s24, 0
      %s294 = scalar_select %p293, %s24, 0
      %s295 = smul.addr %s294, 6
      %s296 = scalar_lea.vmem %s5, %s295
      %s297 = smul.u32 6, %s24
      %p298 = scmp.lt.s32.totalorder %s23, 1
      %s299 = scalar_select %p298, %s23, 1
      %p300 = scmp.lt.s32.totalorder %s297, 5
      %s301 = scalar_select %p300, %s297, 5
      %s302 = smul.addr %s299, 6
      %s303 = sadd.s32 %s301, %s302
      %s304 = smul.addr %s303, 4
      %s305 = scalar_lea.vmem %s6, %s304
      %s306 = smul.u32 6, %s24
      %s307 = smul.u32 6, %s24
      %p308 = scmp.lt.s32.totalorder %s23, 1
      %s309 = scalar_select %p308, %s23, 1
      %p310 = scmp.lt.s32.totalorder %s307, 5
      %s311 = scalar_select %p310, %s307, 5
      %s312 = smul.addr %s309, 6
      %s313 = sadd.s32 %s311, %s312
      %s314 = smul.addr %s313, 8
      %s315 = scalar_lea.vmem %s7, %s314
      %s316 = smul.u32 6, %s24
      %s318 = sand.u32 %s24, 1
      %p319 = scmp.eq.s32.totalorder %s24, 0
      // Predicated region
      $region41: #{dr_double_conv_forward.2} parent=39 // pred_check
        %p320 = pneg %p319
      $region42: #{dr_double_conv_forward.2} parent=39 // pred_check_branch
        %322 = sbr.rel (%p320) target = $region44
      $region43: #{dr_double_conv_forward.2} parent=39 // pred_region
        %s323 = smul.u32 %s24, 768
        %s324 = sshra.s32 %s323, 7
        %s325 = sand.u32 %s323, 127
        %s326 = smul.u32 %s23, 7
        %s327 = sadd.s32 %s324, %s326
        %s328 = smul.addr %s327, 4
        %s329 = scalar_lea.vmem %s0, %s328
        %p331 = scmp.lt.u32.totalorder 28, 8
        %p332 = pneg %p331
        // Predicated region
        $region45: #{dr_double_conv_forward.2} parent=43 // pred_check
          _
        $region46: #{dr_double_conv_forward.2} parent=43 // pred_check_branch
          %334 = sbr.rel (%p331) target = $region48
        $region47: #{dr_double_conv_forward.2} parent=43 // pred_region
          %s349 = sand.u32 28, 7
          %p350 = scmp.eq.s32.totalorder %s349, 0
          %p351 = pneg %p350
          // Predicated region
          $region60: #{dr_double_conv_forward.2} parent=47 // pred_check
            _
          $region61: #{dr_double_conv_forward.2} parent=47 // pred_check_branch
            %353 = sbr.rel (%p350) target = $region63
          $region62: #{dr_double_conv_forward.2} parent=47 // pred_region
            %s354 = sand.u32 28, 7
            %s355 = ssub.s32 28, %s354
            %s356 = scalar_lea.vmem %s329, %s355
            %s357 = ssub.s32 28, %s354
            %s358 = scalar_lea.vmem [#allocation2], %s357
            loop: start=0, step=1, limit=1
            $region64: #{dr_double_conv_forward.2} parent=62 // loop_pre_header
              _
            $region65: #{dr_double_conv_forward.2} parent=62 // loop_header
              %s360 = sphi 0, %s364
              %p361 = scmp.ge.s32.totalorder %s360, 1
              %s365 = sphi %s329, %s329
              %s366 = sphi [#allocation2], [#allocation2]
            $region66: #{dr_double_conv_forward.2} parent=62 // loop_header_branch
              %363 = sbr.rel (%p361) target = $region70
            $region67: #{dr_double_conv_forward.2} parent=62 // loop_body
              %v367 = vld [vmem:[%s365] sm:$0xff]
              %368 = vst [vmem:[%s366] sm:$0xff] %v367
              %v369 = vld [vmem:[%s365 + $0x8] sm:$0xff]
              %370 = vst [vmem:[%s366 + $0x8] sm:$0xff] %v369
              %v371 = vld [vmem:[%s365 + $0x10] sm:$0xff]
              %372 = vst [vmem:[%s366 + $0x10] sm:$0xff] %v371
            $region68: #{dr_double_conv_forward.2} parent=62 // loop_footer
              %s364 = sadd.s32 1, %s360
            $region69: #{dr_double_conv_forward.2} parent=62 // loop_footer_branch
              %359 = sbr.rel target = $region65
            $region70: #{dr_double_conv_forward.2} parent=62 // loop_exit
              _
            %s373 = sshllo.u32 0, %s354
            loop: start=0, step=1, limit=1
            $region71: #{dr_double_conv_forward.2} parent=62 // loop_pre_header
              _
            $region72: #{dr_double_conv_forward.2} parent=62 // loop_header
              %s375 = sphi 0, %s379
              %p376 = scmp.ge.s32.totalorder %s375, 1
              %s380 = sphi %s356, %s356
              %s381 = sphi %s358, %s358
            $region73: #{dr_double_conv_forward.2} parent=62 // loop_header_branch
              %378 = sbr.rel (%p376) target = $region77
            $region74: #{dr_double_conv_forward.2} parent=62 // loop_body
              %v382 = vld [vmem:[%s380] sm:%s373]
              %383 = vst [vmem:[%s381] sm:%s373] %v382
            $region75: #{dr_double_conv_forward.2} parent=62 // loop_footer
              %s379 = sadd.s32 1, %s375
            $region76: #{dr_double_conv_forward.2} parent=62 // loop_footer_branch
              %374 = sbr.rel target = $region72
            $region77: #{dr_double_conv_forward.2} parent=62 // loop_exit
              _
          $region63: #{dr_double_conv_forward.2} parent=47 // pred_fallthru
            _
        $region48: #{dr_double_conv_forward.2} parent=43 // pred_fallthru
          _
        // Predicated region
        $region49: #{dr_double_conv_forward.2} parent=43 // pred_check
          %p335 = pneg %p331
        $region50: #{dr_double_conv_forward.2} parent=43 // pred_check_branch
          %337 = sbr.rel (%p335) target = $region52
        $region51: #{dr_double_conv_forward.2} parent=43 // pred_region
          %s338 = sshllo.u32 0, 28
          loop: start=0, step=1, limit=1
          $region53: #{dr_double_conv_forward.2} parent=51 // loop_pre_header
            _
          $region54: #{dr_double_conv_forward.2} parent=51 // loop_header
            %s340 = sphi 0, %s344
            %p341 = scmp.ge.s32.totalorder %s340, 1
            %s345 = sphi %s329, %s329
            %s346 = sphi [#allocation2], [#allocation2]
          $region55: #{dr_double_conv_forward.2} parent=51 // loop_header_branch
            %343 = sbr.rel (%p341) target = $region59
          $region56: #{dr_double_conv_forward.2} parent=51 // loop_body
            %v347 = vld [vmem:[%s345] sm:%s338]
            %348 = vst [vmem:[%s346] sm:%s338] %v347
          $region57: #{dr_double_conv_forward.2} parent=51 // loop_footer
            %s344 = sadd.s32 1, %s340
          $region58: #{dr_double_conv_forward.2} parent=51 // loop_footer_branch
            %339 = sbr.rel target = $region54
          $region59: #{dr_double_conv_forward.2} parent=51 // loop_exit
            _
        $region52: #{dr_double_conv_forward.2} parent=43 // pred_fallthru
          _
        // Predicated region
        $region78: #{dr_double_conv_forward.2} parent=43 // pred_check
          _
        $region79: #{dr_double_conv_forward.2} parent=43 // pred_check_branch
          %386 = sbr.rel (0) target = $region81
        $region80: #{dr_double_conv_forward.2} parent=43 // pred_region
          %387 = vsyncadd [#allocation3], 448
        $region81: #{dr_double_conv_forward.2} parent=43 // pred_fallthru
          _
      $region44: #{dr_double_conv_forward.2} parent=39 // pred_fallthru
        _
      %s388 = smul.u32 %s24, 768
      %s389 = smul.u32 %s318, 7
      %s390 = smul.addr %s389, 4
      %s391 = scalar_lea.vmem [#allocation2], %s390
      %s392 = scalar_lea.sflag [#allocation3], %s318
      %s393 = smul.u32 4, 1
      %s394 = smul.u32 %s393, 7
      %s395 = sshll.u32 %s394, 4
      %396 = dma.done %s392, %s395
      %s397 = sadd.s32 %s24, 1
      %p398 = scmp.lt.s32.totalorder %s397, 1
      // Predicated region
      $region82: #{dr_double_conv_forward.2} parent=39 // pred_check
        %p399 = pneg %p398
      $region83: #{dr_double_conv_forward.2} parent=39 // pred_check_branch
        %401 = sbr.rel (%p399) target = $region85
      $region84: #{dr_double_conv_forward.2} parent=39 // pred_region
        %s402 = ssub.s32 1, %s318
        %s403 = smul.u32 %s397, 768
        %s404 = sshra.s32 %s403, 7
        %s405 = sand.u32 %s403, 127
        %s406 = smul.u32 %s23, 7
        %s407 = sadd.s32 %s404, %s406
        %s408 = smul.addr %s407, 4
        %s409 = scalar_lea.vmem %s0, %s408
        %s410 = smul.u32 %s402, 7
        %s411 = smul.addr %s410, 4
        %s412 = scalar_lea.vmem [#allocation2], %s411
        %s413 = scalar_lea.sflag [#allocation3], %s402
        %p415 = scmp.lt.u32.totalorder 28, 8
        %p416 = pneg %p415
        // Predicated region
        $region86: #{dr_double_conv_forward.2} parent=84 // pred_check
          _
        $region87: #{dr_double_conv_forward.2} parent=84 // pred_check_branch
          %418 = sbr.rel (%p415) target = $region89
        $region88: #{dr_double_conv_forward.2} parent=84 // pred_region
          %s433 = sand.u32 28, 7
          %p434 = scmp.eq.s32.totalorder %s433, 0
          %p435 = pneg %p434
          // Predicated region
          $region101: #{dr_double_conv_forward.2} parent=88 // pred_check
            _
          $region102: #{dr_double_conv_forward.2} parent=88 // pred_check_branch
            %437 = sbr.rel (%p434) target = $region104
          $region103: #{dr_double_conv_forward.2} parent=88 // pred_region
            %s438 = sand.u32 28, 7
            %s439 = ssub.s32 28, %s438
            %s440 = scalar_lea.vmem %s409, %s439
            %s441 = ssub.s32 28, %s438
            %s442 = scalar_lea.vmem %s412, %s441 [#allocation2]
            loop: start=0, step=1, limit=1
            $region105: #{dr_double_conv_forward.2} parent=103 // loop_pre_header
              _
            $region106: #{dr_double_conv_forward.2} parent=103 // loop_header
              %s444 = sphi 0, %s448
              %p445 = scmp.ge.s32.totalorder %s444, 1
              %s449 = sphi %s409, %s409
              %s450 = sphi %s412, %s412
            $region107: #{dr_double_conv_forward.2} parent=103 // loop_header_branch
              %447 = sbr.rel (%p445) target = $region111
            $region108: #{dr_double_conv_forward.2} parent=103 // loop_body
              %v451 = vld [vmem:[%s449] sm:$0xff]
              %452 = vst [vmem:[%s450] sm:$0xff] %v451
              %v453 = vld [vmem:[%s449 + $0x8] sm:$0xff]
              %454 = vst [vmem:[%s450 + $0x8] sm:$0xff] %v453
              %v455 = vld [vmem:[%s449 + $0x10] sm:$0xff]
              %456 = vst [vmem:[%s450 + $0x10] sm:$0xff] %v455
            $region109: #{dr_double_conv_forward.2} parent=103 // loop_footer
              %s448 = sadd.s32 1, %s444
            $region110: #{dr_double_conv_forward.2} parent=103 // loop_footer_branch
              %443 = sbr.rel target = $region106
            $region111: #{dr_double_conv_forward.2} parent=103 // loop_exit
              _
            %s457 = sshllo.u32 0, %s438
            loop: start=0, step=1, limit=1
            $region112: #{dr_double_conv_forward.2} parent=103 // loop_pre_header
              _
            $region113: #{dr_double_conv_forward.2} parent=103 // loop_header
              %s459 = sphi 0, %s463
              %p460 = scmp.ge.s32.totalorder %s459, 1
              %s464 = sphi %s440, %s440
              %s465 = sphi %s442, %s442
            $region114: #{dr_double_conv_forward.2} parent=103 // loop_header_branch
              %462 = sbr.rel (%p460) target = $region118
            $region115: #{dr_double_conv_forward.2} parent=103 // loop_body
              %v466 = vld [vmem:[%s464] sm:%s457]
              %467 = vst [vmem:[%s465] sm:%s457] %v466
            $region116: #{dr_double_conv_forward.2} parent=103 // loop_footer
              %s463 = sadd.s32 1, %s459
            $region117: #{dr_double_conv_forward.2} parent=103 // loop_footer_branch
              %458 = sbr.rel target = $region113
            $region118: #{dr_double_conv_forward.2} parent=103 // loop_exit
              _
          $region104: #{dr_double_conv_forward.2} parent=88 // pred_fallthru
            _
        $region89: #{dr_double_conv_forward.2} parent=84 // pred_fallthru
          _
        // Predicated region
        $region90: #{dr_double_conv_forward.2} parent=84 // pred_check
          %p419 = pneg %p415
        $region91: #{dr_double_conv_forward.2} parent=84 // pred_check_branch
          %421 = sbr.rel (%p419) target = $region93
        $region92: #{dr_double_conv_forward.2} parent=84 // pred_region
          %s422 = sshllo.u32 0, 28
          loop: start=0, step=1, limit=1
          $region94: #{dr_double_conv_forward.2} parent=92 // loop_pre_header
            _
          $region95: #{dr_double_conv_forward.2} parent=92 // loop_header
            %s424 = sphi 0, %s428
            %p425 = scmp.ge.s32.totalorder %s424, 1
            %s429 = sphi %s409, %s409
            %s430 = sphi %s412, %s412
          $region96: #{dr_double_conv_forward.2} parent=92 // loop_header_branch
            %427 = sbr.rel (%p425) target = $region100
          $region97: #{dr_double_conv_forward.2} parent=92 // loop_body
            %v431 = vld [vmem:[%s429] sm:%s422]
            %432 = vst [vmem:[%s430] sm:%s422] %v431
          $region98: #{dr_double_conv_forward.2} parent=92 // loop_footer
            %s428 = sadd.s32 1, %s424
          $region99: #{dr_double_conv_forward.2} parent=92 // loop_footer_branch
            %423 = sbr.rel target = $region95
          $region100: #{dr_double_conv_forward.2} parent=92 // loop_exit
            _
        $region93: #{dr_double_conv_forward.2} parent=84 // pred_fallthru
          _
        // Predicated region
        $region119: #{dr_double_conv_forward.2} parent=84 // pred_check
          _
        $region120: #{dr_double_conv_forward.2} parent=84 // pred_check_branch
          %470 = sbr.rel (0) target = $region122
        $region121: #{dr_double_conv_forward.2} parent=84 // pred_region
          %471 = vsyncadd %s413, 448
        $region122: #{dr_double_conv_forward.2} parent=84 // pred_fallthru
          _
      $region85: #{dr_double_conv_forward.2} parent=39 // pred_fallthru
        _
      %v472 = vld [vmem:[%s391] sm:$0xff]
      %v473 = vld [vmem:[%s391 + $0x8] sm:$0xff]
      %v474 = vld [vmem:[%s391 + $0x10] sm:$0xff]
      %v475 = vld [vmem:[%s391 + $0x18] sm:$0xf]
      %v479 = vunpack.c.l.b16 %v472
      %v480 = vunpack.c.h.b16 %v472
      %v481 = vunpack.c.l.b16 %v473
      %v482 = vunpack.c.h.b16 %v473
      %v483 = vunpack.c.l.b16 %v474
      %v484 = vunpack.c.h.b16 %v474
      %v485 = vpack.c.b16 %v479, %v479
      %v486 = vpack.c.b16 %v480, %v480
      %v487 = vpack.c.b16 %v481, %v481
      %v488 = vpack.c.b16 %v482, %v482
      %v489 = vpack.c.b16 %v483, %v483
      %v490 = vpack.c.b16 %v484, %v484
      %v492 = vunpack.c.l.b16 %v475
      %v493 = vpack.c.b16 %v492, %v492
      %494 = vrot.lane.b32.xlu0 %v485, 127
      %v495 = vpop.permute.xlu0 %494
      %496 = vrot.lane.b32.xlu0 %v486, 127
      %v497 = vpop.permute.xlu0 %496
      %498 = vrot.lane.b32.xlu0 %v487, 127
      %v499 = vpop.permute.xlu0 %498
      %500 = vrot.lane.b32.xlu0 %v488, 127
      %v501 = vpop.permute.xlu0 %500
      %502 = vrot.lane.b32.xlu0 %v489, 127
      %v503 = vpop.permute.xlu0 %502
      %504 = vrot.lane.b32.xlu0 %v490, 127
      %v505 = vpop.permute.xlu0 %504
      %506 = vrot.lane.b32.xlu0 %v493, 127
      %v507 = vpop.permute.xlu0 %506
      %vm508 = vcmask 1039360
      %v509 = vsel %vm508, %v495, %v497
      %v510 = vsel %vm508, %v497, %v499
      %v511 = vsel %vm508, %v499, %v501
      %v512 = vsel %vm508, %v501, %v503
      %v513 = vsel %vm508, %v503, %v505
      %v514 = vsel %vm508, %v505, %v507
      %515 = vrot.lane.b32.xlu0 %v485, 126
      %v516 = vpop.permute.xlu0 %515
      %517 = vrot.lane.b32.xlu0 %v486, 126
      %v518 = vpop.permute.xlu0 %517
      %519 = vrot.lane.b32.xlu0 %v487, 126
      %v520 = vpop.permute.xlu0 %519
      %521 = vrot.lane.b32.xlu0 %v488, 126
      %v522 = vpop.permute.xlu0 %521
      %523 = vrot.lane.b32.xlu0 %v489, 126
      %v524 = vpop.permute.xlu0 %523
      %525 = vrot.lane.b32.xlu0 %v490, 126
      %v526 = vpop.permute.xlu0 %525
      %527 = vrot.lane.b32.xlu0 %v493, 126
      %v528 = vpop.permute.xlu0 %527
      %vm529 = vcmask 1031168
      %v530 = vsel %vm529, %v516, %v518
      %v531 = vsel %vm529, %v518, %v520
      %v532 = vsel %vm529, %v520, %v522
      %v533 = vsel %vm529, %v522, %v524
      %v534 = vsel %vm529, %v524, %v526
      %v535 = vsel %vm529, %v526, %v528
      %536 = vrot.lane.b32.xlu0 %v485, 104
      %v537 = vpop.permute.xlu0 %536
      %538 = vrot.lane.b32.xlu0 %v486, 104
      %v539 = vpop.permute.xlu0 %538
      %540 = vrot.lane.b32.xlu0 %v487, 104
      %v541 = vpop.permute.xlu0 %540
      %542 = vrot.lane.b32.xlu0 %v488, 104
      %v543 = vpop.permute.xlu0 %542
      %544 = vrot.lane.b32.xlu0 %v489, 104
      %v545 = vpop.permute.xlu0 %544
      %546 = vrot.lane.b32.xlu0 %v490, 104
      %v547 = vpop.permute.xlu0 %546
      %548 = vrot.lane.b32.xlu0 %v493, 104
      %v549 = vpop.permute.xlu0 %548
      %vm550 = vcmask 850944
      %v551 = vsel %vm550, %v537, %v539
      %v552 = vsel %vm550, %v539, %v541
      %v553 = vsel %vm550, %v541, %v543
      %v554 = vsel %vm550, %v543, %v545
      %v555 = vsel %vm550, %v545, %v547
      %v556 = vsel %vm550, %v547, %v549
      %557 = vrot.lane.b32.xlu0 %v485, 103
      %v558 = vpop.permute.xlu0 %557
      %559 = vrot.lane.b32.xlu0 %v486, 103
      %v560 = vpop.permute.xlu0 %559
      %561 = vrot.lane.b32.xlu0 %v487, 103
      %v562 = vpop.permute.xlu0 %561
      %563 = vrot.lane.b32.xlu0 %v488, 103
      %v564 = vpop.permute.xlu0 %563
      %565 = vrot.lane.b32.xlu0 %v489, 103
      %v566 = vpop.permute.xlu0 %565
      %567 = vrot.lane.b32.xlu0 %v490, 103
      %v568 = vpop.permute.xlu0 %567
      %569 = vrot.lane.b32.xlu0 %v493, 103
      %v570 = vpop.permute.xlu0 %569
      %vm571 = vcmask 842752
      %v572 = vsel %vm571, %v558, %v560
      %v573 = vsel %vm571, %v560, %v562
      %v574 = vsel %vm571, %v562, %v564
      %v575 = vsel %vm571, %v564, %v566
      %v576 = vsel %vm571, %v566, %v568
      %v577 = vsel %vm571, %v568, %v570
      %578 = vrot.lane.b32.xlu0 %v485, 102
      %v579 = vpop.permute.xlu0 %578
      %580 = vrot.lane.b32.xlu0 %v486, 102
      %v581 = vpop.permute.xlu0 %580
      %582 = vrot.lane.b32.xlu0 %v487, 102
      %v583 = vpop.permute.xlu0 %582
      %584 = vrot.lane.b32.xlu0 %v488, 102
      %v585 = vpop.permute.xlu0 %584
      %586 = vrot.lane.b32.xlu0 %v489, 102
      %v587 = vpop.permute.xlu0 %586
      %588 = vrot.lane.b32.xlu0 %v490, 102
      %v589 = vpop.permute.xlu0 %588
      %590 = vrot.lane.b32.xlu0 %v493, 102
      %v591 = vpop.permute.xlu0 %590
      %vm592 = vcmask 834560
      %v593 = vsel %vm592, %v579, %v581
      %v594 = vsel %vm592, %v581, %v583
      %v595 = vsel %vm592, %v583, %v585
      %v596 = vsel %vm592, %v585, %v587
      %v597 = vsel %vm592, %v587, %v589
      %v598 = vsel %vm592, %v589, %v591
      %599 = vrot.lane.b32.xlu0 %v485, 80
      %v600 = vpop.permute.xlu0 %599
      %601 = vrot.lane.b32.xlu0 %v486, 80
      %v602 = vpop.permute.xlu0 %601
      %603 = vrot.lane.b32.xlu0 %v487, 80
      %v604 = vpop.permute.xlu0 %603
      %605 = vrot.lane.b32.xlu0 %v488, 80
      %v606 = vpop.permute.xlu0 %605
      %607 = vrot.lane.b32.xlu0 %v489, 80
      %v608 = vpop.permute.xlu0 %607
      %609 = vrot.lane.b32.xlu0 %v490, 80
      %v610 = vpop.permute.xlu0 %609
      %611 = vrot.lane.b32.xlu0 %v493, 80
      %v612 = vpop.permute.xlu0 %611
      %vm613 = vcmask 654336
      %v614 = vsel %vm613, %v600, %v602
      %v615 = vsel %vm613, %v602, %v604
      %v616 = vsel %vm613, %v604, %v606
      %v617 = vsel %vm613, %v606, %v608
      %v618 = vsel %vm613, %v608, %v610
      %v619 = vsel %vm613, %v610, %v612
      %620 = vrot.lane.b32.xlu0 %v485, 79
      %v621 = vpop.permute.xlu0 %620
      %622 = vrot.lane.b32.xlu0 %v486, 79
      %v623 = vpop.permute.xlu0 %622
      %624 = vrot.lane.b32.xlu0 %v487, 79
      %v625 = vpop.permute.xlu0 %624
      %626 = vrot.lane.b32.xlu0 %v488, 79
      %v627 = vpop.permute.xlu0 %626
      %628 = vrot.lane.b32.xlu0 %v489, 79
      %v629 = vpop.permute.xlu0 %628
      %630 = vrot.lane.b32.xlu0 %v490, 79
      %v631 = vpop.permute.xlu0 %630
      %632 = vrot.lane.b32.xlu0 %v493, 79
      %v633 = vpop.permute.xlu0 %632
      %vm634 = vcmask 646144
      %v635 = vsel %vm634, %v621, %v623
      %v636 = vsel %vm634, %v623, %v625
      %v637 = vsel %vm634, %v625, %v627
      %v638 = vsel %vm634, %v627, %v629
      %v639 = vsel %vm634, %v629, %v631
      %v640 = vsel %vm634, %v631, %v633
      %641 = vrot.lane.b32.xlu0 %v485, 78
      %v642 = vpop.permute.xlu0 %641
      %643 = vrot.lane.b32.xlu0 %v486, 78
      %v644 = vpop.permute.xlu0 %643
      %645 = vrot.lane.b32.xlu0 %v487, 78
      %v646 = vpop.permute.xlu0 %645
      %647 = vrot.lane.b32.xlu0 %v488, 78
      %v648 = vpop.permute.xlu0 %647
      %649 = vrot.lane.b32.xlu0 %v489, 78
      %v650 = vpop.permute.xlu0 %649
      %651 = vrot.lane.b32.xlu0 %v490, 78
      %v652 = vpop.permute.xlu0 %651
      %653 = vrot.lane.b32.xlu0 %v493, 78
      %v654 = vpop.permute.xlu0 %653
      %vm655 = vcmask 637952
      %v656 = vsel %vm655, %v642, %v644
      %v657 = vsel %vm655, %v644, %v646
      %v658 = vsel %vm655, %v646, %v648
      %v659 = vsel %vm655, %v648, %v650
      %v660 = vsel %vm655, %v650, %v652
      %v661 = vsel %vm655, %v652, %v654
      %vm662 = vcmask 1043456
      %v665 = vsel %vm662, %v485, %v509
      %v669 = vsel %vm662, %v486, %v510
      %v673 = vsel %vm662, %v487, %v511
      %v677 = vsel %vm662, %v488, %v512
      %v681 = vsel %vm662, %v489, %v513
      %v685 = vsel %vm662, %v490, %v514
      %v689 = vsel %vm662, %v530, %v551
      %v693 = vsel %vm662, %v531, %v552
      %v697 = vsel %vm662, %v532, %v553
      %v701 = vsel %vm662, %v533, %v554
      %v705 = vsel %vm662, %v534, %v555
      %v709 = vsel %vm662, %v535, %v556
      %v713 = vsel %vm662, %v572, %v593
      %v717 = vsel %vm662, %v573, %v594
      %v721 = vsel %vm662, %v574, %v595
      %v725 = vsel %vm662, %v575, %v596
      %v729 = vsel %vm662, %v576, %v597
      %v733 = vsel %vm662, %v577, %v598
      %v737 = vsel %vm662, %v614, %v635
      %v741 = vsel %vm662, %v615, %v636
      %v745 = vsel %vm662, %v616, %v637
      %v749 = vsel %vm662, %v617, %v638
      %v753 = vsel %vm662, %v618, %v639
      %v757 = vsel %vm662, %v619, %v640
      %v759 = vld [vmem:[%s292] sm:$0xf]
      %v760 = vld [vmem:[%s292 + $0x4] sm:$0xf]
      %v761 = vld [vmem:[%s292 + $0x8] sm:$0xf]
      %v762 = vld [vmem:[%s292 + $0xc] sm:$0xf]
      %v763 = vld [vmem:[%s292 + $0x10] sm:$0xf]
      %v764 = vld [vmem:[%s292 + $0x14] sm:$0xf]
      %v765 = vld [vmem:[%s292 + $0x18] sm:$0xf]
      %v766 = vld [vmem:[%s292 + $0x1c] sm:$0xf]
      %v767 = vld [vmem:[%s292 + $0x20] sm:$0xf]
      %v777 = vunpack.c.l.b16 %v759
      %v778 = vunpack.c.l.b16 %v760
      %v779 = vunpack.c.l.b16 %v761
      %v780 = vunpack.c.l.b16 %v762
      %v781 = vunpack.c.l.b16 %v763
      %v782 = vunpack.c.l.b16 %v764
      %v783 = vunpack.c.l.b16 %v765
      %v784 = vunpack.c.l.b16 %v766
      %v785 = vunpack.c.l.b16 %v767
      %v786 = vpack.c.b16 %v778, %v777
      %v787 = vpack.c.b16 %v780, %v779
      %v788 = vpack.c.b16 %v782, %v781
      %v789 = vpack.c.b16 %v784, %v783
      %v790 = vpack.c.b16 %v785, %v785
      %vm791 = vcmask 588800
      %v793 = vsel %vm791, %v786, 0
      %v796 = vsel %vm791, %v787, 0
      %v799 = vsel %vm791, %v788, 0
      %v802 = vsel %vm791, %v789, 0
      %v805 = vsel %vm791, %v790, 0
      %v808 = vsel %vm662, %v656, 0
      %v811 = vsel %vm662, %v657, 0
      %v814 = vsel %vm662, %v658, 0
      %v817 = vsel %vm662, %v659, 0
      %v820 = vsel %vm662, %v660, 0
      %v823 = vsel %vm662, %v661, 0
      %825 = vmatprep.subr.bf16.mxu0 %v669
      %826 = vmatpush1.bf16.msra.mxu0 %v665
      %827 = vmatprep.subr.bf16.mxu0 %v693
      %828 = vmatpush1.bf16.msra.mxu0 %v689
      %829 = vmatprep.subr.bf16.mxu0 %v717
      %830 = vmatpush1.bf16.msra.mxu0 %v713
      %831 = vmatprep.subr.bf16.mxu0 %v741
      %832 = vmatpush1.bf16.msra.mxu0 %v737
      %833 = vmatprep.subr.bf16.mxu0 %v811
      %834 = vmatpush1.bf16.msra.mxu0 %v808
      %835 = vmatprep.subr.bf16.mxu0 0
      %836 = vmatpush1.bf16.msra.mxu0 0
      %837 = vmatprep.subr.bf16.mxu0 0
      %838 = vmatpush1.bf16.msra.mxu0 0
      %839 = vmatprep.subr.bf16.mxu0 0
      %840 = vmatpush1.bf16.msra.mxu0 0
      %841 = vmatprep.subr.bf16.mxu0 0
      %842 = vmatpush1.bf16.msra.mxu0 0
      %843 = vmatprep.subr.bf16.mxu0 0
      %844 = vmatpush1.bf16.msra.mxu0 0
      %845 = vmatprep.subr.bf16.mxu0 0
      %846 = vmatpush1.bf16.msra.mxu0 0
      %847 = vmatprep.subr.bf16.mxu0 0
      %848 = vmatpush1.bf16.msra.mxu0 0
      %849 = vmatprep.subr.bf16.mxu0 0
      %850 = vmatpush1.bf16.msra.mxu0 0
      %851 = vmatprep.subr.bf16.mxu0 0
      %852 = vmatpush1.bf16.msra.mxu0 0
      %853 = vmatprep.subr.bf16.mxu0 0
      %854 = vmatpush1.bf16.msra.mxu0 0
      %855 = vmatprep.subr.bf16.mxu0 0
      %856 = vmatpush1.bf16.msra.mxu0 0
      %857 = vmatprep.mubr.bf16.mxu0 0
      %858 = vmatmul.mubr.bf16.gmra.mrb[0].mxu0 %v793
      %v859 = vpop.f32.mrb[0].mxu0
      %v860 = vadd.f32 0.0, %v859
      %v861 = vpop.f32.mrb[0].mxu0
      %v862 = vadd.f32 0.0, %v861
      %v863 = vpop.f32.mrb[0].mxu0
      %v864 = vadd.f32 0.0, %v863
      %v865 = vpop.f32.mrb[0].mxu0
      %v866 = vadd.f32 0.0, %v865
      %867 = vmatprep.mubr.bf16.mxu0 0
      %868 = vmatmul.mubr.bf16.gmra.mrb[0].mxu0 %v796
      %v869 = vpop.f32.mrb[0].mxu0
      %v870 = vadd.f32 0.0, %v869
      %v871 = vpop.f32.mrb[0].mxu0
      %v872 = vadd.f32 0.0, %v871
      %v873 = vpop.f32.mrb[0].mxu0
      %v874 = vadd.f32 0.0, %v873
      %v875 = vpop.f32.mrb[0].mxu0
      %v876 = vadd.f32 0.0, %v875
      %877 = vmatprep.mubr.bf16.mxu0 0
      %878 = vmatmul.mubr.bf16.gmra.mrb[0].mxu0 %v799
      %v879 = vpop.f32.mrb[0].mxu0
      %v880 = vadd.f32 0.0, %v879
      %v881 = vpop.f32.mrb[0].mxu0
      %v882 = vadd.f32 0.0, %v881
      %v883 = vpop.f32.mrb[0].mxu0
      %v884 = vadd.f32 0.0, %v883
      %v885 = vpop.f32.mrb[0].mxu0
      %v886 = vadd.f32 0.0, %v885
      %887 = vmatprep.mubr.bf16.mxu0 0
      %888 = vmatmul.mubr.bf16.gmra.mrb[0].mxu0 %v802
      %v889 = vpop.f32.mrb[0].mxu0
      %v890 = vadd.f32 0.0, %v889
      %v891 = vpop.f32.mrb[0].mxu0
      %v892 = vadd.f32 0.0, %v891
      %v893 = vpop.f32.mrb[0].mxu0
      %v894 = vadd.f32 0.0, %v893
      %v895 = vpop.f32.mrb[0].mxu0
      %v896 = vadd.f32 0.0, %v895
      %897 = vmatprep.mubr.bf16.mxu0 0
      %898 = vmatmul.mubr.bf16.gmra.mrb[0].mxu0 %v805
      %v899 = vpop.f32.mrb[0].mxu0
      %v900 = vadd.f32 0.0, %v899
      %v901 = vpop.f32.mrb[0].mxu0
      %v902 = vadd.f32 0.0, %v901
      %v903 = vpop.f32.mrb[0].mxu0
      %v904 = vpop.f32.mrb[0].mxu0
      %905 = vdwg.mxu0
      %906 = vmatprep.subr.bf16.mxu0 %v677
      %907 = vmatpush1.bf16.msra.mxu0 %v673
      %908 = vmatprep.subr.bf16.mxu0 %v701
      %909 = vmatpush1.bf16.msra.mxu0 %v697
      %910 = vmatprep.subr.bf16.mxu0 %v725
      %911 = vmatpush1.bf16.msra.mxu0 %v721
      %912 = vmatprep.subr.bf16.mxu0 %v749
      %913 = vmatpush1.bf16.msra.mxu0 %v745
      %914 = vmatprep.subr.bf16.mxu0 %v817
      %915 = vmatpush1.bf16.msra.mxu0 %v814
      %916 = vmatprep.subr.bf16.mxu0 0
      %917 = vmatpush1.bf16.msra.mxu0 0
      %918 = vmatprep.subr.bf16.mxu0 0
      %919 = vmatpush1.bf16.msra.mxu0 0
      %920 = vmatprep.subr.bf16.mxu0 0
      %921 = vmatpush1.bf16.msra.mxu0 0
      %922 = vmatprep.subr.bf16.mxu0 0
      %923 = vmatpush1.bf16.msra.mxu0 0
      %924 = vmatprep.subr.bf16.mxu0 0
      %925 = vmatpush1.bf16.msra.mxu0 0
      %926 = vmatprep.subr.bf16.mxu0 0
      %927 = vmatpush1.bf16.msra.mxu0 0
      %928 = vmatprep.subr.bf16.mxu0 0
      %929 = vmatpush1.bf16.msra.mxu0 0
      %930 = vmatprep.subr.bf16.mxu0 0
      %931 = vmatpush1.bf16.msra.mxu0 0
      %932 = vmatprep.subr.bf16.mxu0 0
      %933 = vmatpush1.bf16.msra.mxu0 0
      %934 = vmatprep.subr.bf16.mxu0 0
      %935 = vmatpush1.bf16.msra.mxu0 0
      %936 = vmatprep.subr.bf16.mxu0 0
      %937 = vmatpush1.bf16.msra.mxu0 0
      %938 = vmatprep.mubr.bf16.mxu0 0
      %939 = vmatmul.mubr.bf16.gmra.mrb[0].mxu0 %v793
      %v940 = vpop.f32.mrb[0].mxu0
      %v941 = vadd.f32 0.0, %v940
      %v942 = vpop.f32.mrb[0].mxu0
      %v943 = vadd.f32 0.0, %v942
      %v944 = vpop.f32.mrb[0].mxu0
      %v945 = vadd.f32 0.0, %v944
      %v946 = vpop.f32.mrb[0].mxu0
      %v947 = vadd.f32 0.0, %v946
      %948 = vmatprep.mubr.bf16.mxu0 0
      %949 = vmatmul.mubr.bf16.gmra.mrb[0].mxu0 %v796
      %v950 = vpop.f32.mrb[0].mxu0
      %v951 = vadd.f32 0.0, %v950
      %v952 = vpop.f32.mrb[0].mxu0
      %v953 = vadd.f32 0.0, %v952
      %v954 = vpop.f32.mrb[0].mxu0
      %v955 = vadd.f32 0.0, %v954
      %v956 = vpop.f32.mrb[0].mxu0
      %v957 = vadd.f32 0.0, %v956
      %958 = vmatprep.mubr.bf16.mxu0 0
      %959 = vmatmul.mubr.bf16.gmra.mrb[0].mxu0 %v799
      %v960 = vpop.f32.mrb[0].mxu0
      %v961 = vadd.f32 0.0, %v960
      %v962 = vpop.f32.mrb[0].mxu0
      %v963 = vadd.f32 0.0, %v962
      %v964 = vpop.f32.mrb[0].mxu0
      %v965 = vadd.f32 0.0, %v964
      %v966 = vpop.f32.mrb[0].mxu0
      %v967 = vadd.f32 0.0, %v966
      %968 = vmatprep.mubr.bf16.mxu0 0
      %969 = vmatmul.mubr.bf16.gmra.mrb[0].mxu0 %v802
      %v970 = vpop.f32.mrb[0].mxu0
      %v971 = vadd.f32 0.0, %v970
      %v972 = vpop.f32.mrb[0].mxu0
      %v973 = vadd.f32 0.0, %v972
      %v974 = vpop.f32.mrb[0].mxu0
      %v975 = vadd.f32 0.0, %v974
      %v976 = vpop.f32.mrb[0].mxu0
      %v977 = vadd.f32 0.0, %v976
      %978 = vmatprep.mubr.bf16.mxu0 0
      %979 = vmatmul.mubr.bf16.gmra.mrb[0].mxu0 %v805
      %v980 = vpop.f32.mrb[0].mxu0
      %v981 = vadd.f32 0.0, %v980
      %v982 = vpop.f32.mrb[0].mxu0
      %v983 = vadd.f32 0.0, %v982
      %v984 = vpop.f32.mrb[0].mxu0
      %v985 = vpop.f32.mrb[0].mxu0
      %986 = vdwg.mxu0
      %987 = vmatprep.subr.bf16.mxu0 %v685
      %988 = vmatpush1.bf16.msra.mxu0 %v681
      %989 = vmatprep.subr.bf16.mxu0 %v709
      %990 = vmatpush1.bf16.msra.mxu0 %v705
      %991 = vmatprep.subr.bf16.mxu0 %v733
      %992 = vmatpush1.bf16.msra.mxu0 %v729
      %993 = vmatprep.subr.bf16.mxu0 %v757
      %994 = vmatpush1.bf16.msra.mxu0 %v753
      %995 = vmatprep.subr.bf16.mxu0 %v823
      %996 = vmatpush1.bf16.msra.mxu0 %v820
      %997 = vmatprep.subr.bf16.mxu0 0
      %998 = vmatpush1.bf16.msra.mxu0 0
      %999 = vmatprep.subr.bf16.mxu0 0
      %1000 = vmatpush1.bf16.msra.mxu0 0
      %1001 = vmatprep.subr.bf16.mxu0 0
      %1002 = vmatpush1.bf16.msra.mxu0 0
      %1003 = vmatprep.subr.bf16.mxu0 0
      %1004 = vmatpush1.bf16.msra.mxu0 0
      %1005 = vmatprep.subr.bf16.mxu0 0
      %1006 = vmatpush1.bf16.msra.mxu0 0
      %1007 = vmatprep.subr.bf16.mxu0 0
      %1008 = vmatpush1.bf16.msra.mxu0 0
      %1009 = vmatprep.subr.bf16.mxu0 0
      %1010 = vmatpush1.bf16.msra.mxu0 0
      %1011 = vmatprep.subr.bf16.mxu0 0
      %1012 = vmatpush1.bf16.msra.mxu0 0
      %1013 = vmatprep.subr.bf16.mxu0 0
      %1014 = vmatpush1.bf16.msra.mxu0 0
      %1015 = vmatprep.subr.bf16.mxu0 0
      %1016 = vmatpush1.bf16.msra.mxu0 0
      %1017 = vmatprep.subr.bf16.mxu0 0
      %1018 = vmatpush1.bf16.msra.mxu0 0
      %1019 = vmatprep.mubr.bf16.mxu0 0
      %1020 = vmatmul.mubr.bf16.gmra.mrb[0].mxu0 %v793
      %v1021 = vpop.f32.mrb[0].mxu0
      %v1022 = vadd.f32 0.0, %v1021
      %v1023 = vpop.f32.mrb[0].mxu0
      %v1024 = vadd.f32 0.0, %v1023
      %v1025 = vpop.f32.mrb[0].mxu0
      %v1026 = vadd.f32 0.0, %v1025
      %v1027 = vpop.f32.mrb[0].mxu0
      %v1028 = vadd.f32 0.0, %v1027
      %1029 = vmatprep.mubr.bf16.mxu0 0
      %1030 = vmatmul.mubr.bf16.gmra.mrb[0].mxu0 %v796
      %v1031 = vpop.f32.mrb[0].mxu0
      %v1032 = vadd.f32 0.0, %v1031
      %v1033 = vpop.f32.mrb[0].mxu0
      %v1034 = vadd.f32 0.0, %v1033
      %v1035 = vpop.f32.mrb[0].mxu0
      %v1036 = vadd.f32 0.0, %v1035
      %v1037 = vpop.f32.mrb[0].mxu0
      %v1038 = vadd.f32 0.0, %v1037
      %1039 = vmatprep.mubr.bf16.mxu0 0
      %1040 = vmatmul.mubr.bf16.gmra.mrb[0].mxu0 %v799
      %v1041 = vpop.f32.mrb[0].mxu0
      %v1042 = vadd.f32 0.0, %v1041
      %v1043 = vpop.f32.mrb[0].mxu0
      %v1044 = vadd.f32 0.0, %v1043
      %v1045 = vpop.f32.mrb[0].mxu0
      %v1046 = vadd.f32 0.0, %v1045
      %v1047 = vpop.f32.mrb[0].mxu0
      %v1048 = vadd.f32 0.0, %v1047
      %1049 = vmatprep.mubr.bf16.mxu0 0
      %1050 = vmatmul.mubr.bf16.gmra.mrb[0].mxu0 %v802
      %v1051 = vpop.f32.mrb[0].mxu0
      %v1052 = vadd.f32 0.0, %v1051
      %v1053 = vpop.f32.mrb[0].mxu0
      %v1054 = vadd.f32 0.0, %v1053
      %v1055 = vpop.f32.mrb[0].mxu0
      %v1056 = vadd.f32 0.0, %v1055
      %v1057 = vpop.f32.mrb[0].mxu0
      %v1058 = vadd.f32 0.0, %v1057
      %1059 = vmatprep.mubr.bf16.mxu0 0
      %1060 = vmatmul.mubr.bf16.gmra.mrb[0].mxu0 %v805
      %v1061 = vpop.f32.mrb[0].mxu0
      %v1062 = vadd.f32 0.0, %v1061
      %v1063 = vpop.f32.mrb[0].mxu0
      %v1064 = vadd.f32 0.0, %v1063
      %v1065 = vpop.f32.mrb[0].mxu0
      %v1066 = vpop.f32.mrb[0].mxu0
      %1067 = vdwg.mxu0
      %v1068 = vld [vmem:[%s2] sm:$0xff]
      %1070 = vset.pattern.permute.xlu0 0
      %1071 = vperm.xlu0 %1070, %v1068
      %v1072 = vpop.permute.xlu0 %1071
      %v1074 = vadd.f32 %v900, %v1072
      %v1075 = vadd.f32 %v902, %v1072
      %v1076 = vadd.f32 %v981, %v1072
      %v1077 = vadd.f32 %v983, %v1072
      %v1078 = vadd.f32 %v1062, %v1072
      %v1079 = vadd.f32 %v1064, %v1072
      %1080 = vst [vmem:[%s315] sm:$0xff] %v1074
      %1081 = vst [vmem:[%s315 + $0x8] sm:$0xff] %v1075
      %1082 = vst [vmem:[%s315 + $0x10] sm:$0xff] %v1076
      %1083 = vst [vmem:[%s315 + $0x18] sm:$0xff] %v1077
      %1084 = vst [vmem:[%s315 + $0x20] sm:$0xff] %v1078
      %1085 = vst [vmem:[%s315 + $0x28] sm:$0xff] %v1079
      %v1086 = vrot.slane %v1074, 4
      %v1087 = vmax.f32 %v1074, %v1086
      %v1088 = vrot.slane %v1087, 2
      %v1089 = vmax.f32 %v1087, %v1088
      %v1090 = vrot.slane %v1089, 1
      %v1091 = vmax.f32 %v1089, %v1090
      %v1092 = vrot.slane %v1075, 4
      %v1093 = vmax.f32 %v1075, %v1092
      %v1094 = vrot.slane %v1093, 2
      %v1095 = vmax.f32 %v1093, %v1094
      %v1096 = vrot.slane %v1095, 1
      %v1097 = vmax.f32 %v1095, %v1096
      %v1098 = vrot.slane %v1076, 4
      %v1099 = vmax.f32 %v1076, %v1098
      %v1100 = vrot.slane %v1099, 2
      %v1101 = vmax.f32 %v1099, %v1100
      %v1102 = vrot.slane %v1101, 1
      %v1103 = vmax.f32 %v1101, %v1102
      %v1104 = vrot.slane %v1077, 4
      %v1105 = vmax.f32 %v1077, %v1104
      %v1106 = vrot.slane %v1105, 2
      %v1107 = vmax.f32 %v1105, %v1106
      %v1108 = vrot.slane %v1107, 1
      %v1109 = vmax.f32 %v1107, %v1108
      %v1110 = vrot.slane %v1078, 4
      %v1111 = vmax.f32 %v1078, %v1110
      %v1112 = vrot.slane %v1111, 2
      %v1113 = vmax.f32 %v1111, %v1112
      %v1114 = vrot.slane %v1113, 1
      %v1115 = vmax.f32 %v1113, %v1114
      %v1116 = vrot.slane %v1079, 4
      %v1117 = vmax.f32 %v1079, %v1116
      %v1118 = vrot.slane %v1117, 2
      %v1119 = vmax.f32 %v1117, %v1118
      %v1120 = vrot.slane %v1119, 1
      %v1121 = vmax.f32 %v1119, %v1120
      %v1122 = vlaneseq
      %v1123 = vshrl.u32 %v1122, 7
      %vm1124 = vcmp.eq.f32.partialorder %v1074, %v1091
      %vm1125 = vcmp.eq.f32.partialorder %v1075, %v1097
      %vm1126 = vcmp.eq.f32.partialorder %v1076, %v1103
      %vm1127 = vcmp.eq.f32.partialorder %v1077, %v1109
      %vm1128 = vcmp.eq.f32.partialorder %v1078, %v1115
      %vm1129 = vcmp.eq.f32.partialorder %v1079, %v1121
      %v1130 = vsel %vm1124, %v1123, 8
      %v1131 = vsel %vm1125, %v1123, 8
      %v1132 = vsel %vm1126, %v1123, 8
      %v1133 = vsel %vm1127, %v1123, 8
      %v1134 = vsel %vm1128, %v1123, 8
      %v1135 = vsel %vm1129, %v1123, 8
      %v1136 = vrot.slane %v1130, 4
      %vm1137 = vcmp.lt.s32.totalorder %v1130, %v1136
      %v1138 = vsel %vm1137, %v1130, %v1136
      %v1139 = vrot.slane %v1138, 2
      %vm1140 = vcmp.lt.s32.totalorder %v1138, %v1139
      %v1141 = vsel %vm1140, %v1138, %v1139
      %v1142 = vrot.slane %v1141, 1
      %vm1143 = vcmp.lt.s32.totalorder %v1141, %v1142
      %v1144 = vsel %vm1143, %v1141, %v1142
      %v1145 = vrot.slane %v1131, 4
      %vm1146 = vcmp.lt.s32.totalorder %v1131, %v1145
      %v1147 = vsel %vm1146, %v1131, %v1145
      %v1148 = vrot.slane %v1147, 2
      %vm1149 = vcmp.lt.s32.totalorder %v1147, %v1148
      %v1150 = vsel %vm1149, %v1147, %v1148
      %v1151 = vrot.slane %v1150, 1
      %vm1152 = vcmp.lt.s32.totalorder %v1150, %v1151
      %v1153 = vsel %vm1152, %v1150, %v1151
      %v1154 = vrot.slane %v1132, 4
      %vm1155 = vcmp.lt.s32.totalorder %v1132, %v1154
      %v1156 = vsel %vm1155, %v1132, %v1154
      %v1157 = vrot.slane %v1156, 2
      %vm1158 = vcmp.lt.s32.totalorder %v1156, %v1157
      %v1159 = vsel %vm1158, %v1156, %v1157
      %v1160 = vrot.slane %v1159, 1
      %vm1161 = vcmp.lt.s32.totalorder %v1159, %v1160
      %v1162 = vsel %vm1161, %v1159, %v1160
      %v1163 = vrot.slane %v1133, 4
      %vm1164 = vcmp.lt.s32.totalorder %v1133, %v1163
      %v1165 = vsel %vm1164, %v1133, %v1163
      %v1166 = vrot.slane %v1165, 2
      %vm1167 = vcmp.lt.s32.totalorder %v1165, %v1166
      %v1168 = vsel %vm1167, %v1165, %v1166
      %v1169 = vrot.slane %v1168, 1
      %vm1170 = vcmp.lt.s32.totalorder %v1168, %v1169
      %v1171 = vsel %vm1170, %v1168, %v1169
      %v1172 = vrot.slane %v1134, 4
      %vm1173 = vcmp.lt.s32.totalorder %v1134, %v1172
      %v1174 = vsel %vm1173, %v1134, %v1172
      %v1175 = vrot.slane %v1174, 2
      %vm1176 = vcmp.lt.s32.totalorder %v1174, %v1175
      %v1177 = vsel %vm1176, %v1174, %v1175
      %v1178 = vrot.slane %v1177, 1
      %vm1179 = vcmp.lt.s32.totalorder %v1177, %v1178
      %v1180 = vsel %vm1179, %v1177, %v1178
      %v1181 = vrot.slane %v1135, 4
      %vm1182 = vcmp.lt.s32.totalorder %v1135, %v1181
      %v1183 = vsel %vm1182, %v1135, %v1181
      %v1184 = vrot.slane %v1183, 2
      %vm1185 = vcmp.lt.s32.totalorder %v1183, %v1184
      %v1186 = vsel %vm1185, %v1183, %v1184
      %v1187 = vrot.slane %v1186, 1
      %vm1188 = vcmp.lt.s32.totalorder %v1186, %v1187
      %v1189 = vsel %vm1188, %v1186, %v1187
      %vm1190 = vcmp.eq.s32.totalorder %v1144, 0
      %vm1191 = vcmp.eq.s32.totalorder %v1153, 0
      %vm1192 = vcmp.eq.s32.totalorder %v1162, 0
      %vm1193 = vcmp.eq.s32.totalorder %v1171, 0
      %vm1194 = vcmp.eq.s32.totalorder %v1180, 0
      %vm1195 = vcmp.eq.s32.totalorder %v1189, 0
      %v1196 = vsel %vm1190, 1, 0
      %v1197 = vsel %vm1191, 1, 0
      %v1198 = vsel %vm1192, 1, 0
      %v1199 = vsel %vm1193, 1, 0
      %v1200 = vsel %vm1194, 1, 0
      %v1201 = vsel %vm1195, 1, 0
      %vm1202 = vcmp.eq.s32.totalorder %v1196, 1
      %vm1203 = vcmp.eq.s32.totalorder %v1197, 1
      %vm1204 = vcmp.eq.s32.totalorder %v1198, 1
      %vm1205 = vcmp.eq.s32.totalorder %v1199, 1
      %vm1206 = vcmp.eq.s32.totalorder %v1200, 1
      %vm1207 = vcmp.eq.s32.totalorder %v1201, 1
      %v1208 = vsel %vm1202, %v860, 0.0
      %v1209 = vsel %vm1203, %v862, 0.0
      %v1210 = vsel %vm1204, %v941, 0.0
      %v1211 = vsel %vm1205, %v943, 0.0
      %v1212 = vsel %vm1206, %v1022, 0.0
      %v1213 = vsel %vm1207, %v1024, 0.0
      %vm1214 = vcmp.eq.s32.totalorder %v1144, 1
      %vm1215 = vcmp.eq.s32.totalorder %v1153, 1
      %vm1216 = vcmp.eq.s32.totalorder %v1162, 1
      %vm1217 = vcmp.eq.s32.totalorder %v1171, 1
      %vm1218 = vcmp.eq.s32.totalorder %v1180, 1
      %vm1219 = vcmp.eq.s32.totalorder %v1189, 1
      %v1220 = vsel %vm1214, 1, 0
      %v1221 = vsel %vm1215, 1, 0
      %v1222 = vsel %vm1216, 1, 0
      %v1223 = vsel %vm1217, 1, 0
      %v1224 = vsel %vm1218, 1, 0
      %v1225 = vsel %vm1219, 1, 0
      %vm1226 = vcmp.eq.s32.totalorder %v1220, 1
      %vm1227 = vcmp.eq.s32.totalorder %v1221, 1
      %vm1228 = vcmp.eq.s32.totalorder %v1222, 1
      %vm1229 = vcmp.eq.s32.totalorder %v1223, 1
      %vm1230 = vcmp.eq.s32.totalorder %v1224, 1
      %vm1231 = vcmp.eq.s32.totalorder %v1225, 1
      %v1232 = vsel %vm1226, %v864, 0.0
      %v1233 = vsel %vm1227, %v866, 0.0
      %v1234 = vsel %vm1228, %v945, 0.0
      %v1235 = vsel %vm1229, %v947, 0.0
      %v1236 = vsel %vm1230, %v1026, 0.0
      %v1237 = vsel %vm1231, %v1028, 0.0
      %v1238 = vadd.f32 %v1208, %v1232
      %v1239 = vadd.f32 %v1209, %v1233
      %v1240 = vadd.f32 %v1210, %v1234
      %v1241 = vadd.f32 %v1211, %v1235
      %v1242 = vadd.f32 %v1212, %v1236
      %v1243 = vadd.f32 %v1213, %v1237
      %vm1244 = vcmp.eq.s32.totalorder %v1144, 2
      %vm1245 = vcmp.eq.s32.totalorder %v1153, 2
      %vm1246 = vcmp.eq.s32.totalorder %v1162, 2
      %vm1247 = vcmp.eq.s32.totalorder %v1171, 2
      %vm1248 = vcmp.eq.s32.totalorder %v1180, 2
      %vm1249 = vcmp.eq.s32.totalorder %v1189, 2
      %v1250 = vsel %vm1244, 1, 0
      %v1251 = vsel %vm1245, 1, 0
      %v1252 = vsel %vm1246, 1, 0
      %v1253 = vsel %vm1247, 1, 0
      %v1254 = vsel %vm1248, 1, 0
      %v1255 = vsel %vm1249, 1, 0
      %vm1256 = vcmp.eq.s32.totalorder %v1250, 1
      %vm1257 = vcmp.eq.s32.totalorder %v1251, 1
      %vm1258 = vcmp.eq.s32.totalorder %v1252, 1
      %vm1259 = vcmp.eq.s32.totalorder %v1253, 1
      %vm1260 = vcmp.eq.s32.totalorder %v1254, 1
      %vm1261 = vcmp.eq.s32.totalorder %v1255, 1
      %v1262 = vsel %vm1256, %v870, 0.0
      %v1263 = vsel %vm1257, %v872, 0.0
      %v1264 = vsel %vm1258, %v951, 0.0
      %v1265 = vsel %vm1259, %v953, 0.0
      %v1266 = vsel %vm1260, %v1032, 0.0
      %v1267 = vsel %vm1261, %v1034, 0.0
      %v1268 = vadd.f32 %v1238, %v1262
      %v1269 = vadd.f32 %v1239, %v1263
      %v1270 = vadd.f32 %v1240, %v1264
      %v1271 = vadd.f32 %v1241, %v1265
      %v1272 = vadd.f32 %v1242, %v1266
      %v1273 = vadd.f32 %v1243, %v1267
      %vm1274 = vcmp.eq.s32.totalorder %v1144, 3
      %vm1275 = vcmp.eq.s32.totalorder %v1153, 3
      %vm1276 = vcmp.eq.s32.totalorder %v1162, 3
      %vm1277 = vcmp.eq.s32.totalorder %v1171, 3
      %vm1278 = vcmp.eq.s32.totalorder %v1180, 3
      %vm1279 = vcmp.eq.s32.totalorder %v1189, 3
      %v1280 = vsel %vm1274, 1, 0
      %v1281 = vsel %vm1275, 1, 0
      %v1282 = vsel %vm1276, 1, 0
      %v1283 = vsel %vm1277, 1, 0
      %v1284 = vsel %vm1278, 1, 0
      %v1285 = vsel %vm1279, 1, 0
      %vm1286 = vcmp.eq.s32.totalorder %v1280, 1
      %vm1287 = vcmp.eq.s32.totalorder %v1281, 1
      %vm1288 = vcmp.eq.s32.totalorder %v1282, 1
      %vm1289 = vcmp.eq.s32.totalorder %v1283, 1
      %vm1290 = vcmp.eq.s32.totalorder %v1284, 1
      %vm1291 = vcmp.eq.s32.totalorder %v1285, 1
      %v1292 = vsel %vm1286, %v874, 0.0
      %v1293 = vsel %vm1287, %v876, 0.0
      %v1294 = vsel %vm1288, %v955, 0.0
      %v1295 = vsel %vm1289, %v957, 0.0
      %v1296 = vsel %vm1290, %v1036, 0.0
      %v1297 = vsel %vm1291, %v1038, 0.0
      %v1298 = vadd.f32 %v1268, %v1292
      %v1299 = vadd.f32 %v1269, %v1293
      %v1300 = vadd.f32 %v1270, %v1294
      %v1301 = vadd.f32 %v1271, %v1295
      %v1302 = vadd.f32 %v1272, %v1296
      %v1303 = vadd.f32 %v1273, %v1297
      %vm1304 = vcmp.eq.s32.totalorder %v1144, 4
      %vm1305 = vcmp.eq.s32.totalorder %v1153, 4
      %vm1306 = vcmp.eq.s32.totalorder %v1162, 4
      %vm1307 = vcmp.eq.s32.totalorder %v1171, 4
      %vm1308 = vcmp.eq.s32.totalorder %v1180, 4
      %vm1309 = vcmp.eq.s32.totalorder %v1189, 4
      %v1310 = vsel %vm1304, 1, 0
      %v1311 = vsel %vm1305, 1, 0
      %v1312 = vsel %vm1306, 1, 0
      %v1313 = vsel %vm1307, 1, 0
      %v1314 = vsel %vm1308, 1, 0
      %v1315 = vsel %vm1309, 1, 0
      %vm1316 = vcmp.eq.s32.totalorder %v1310, 1
      %vm1317 = vcmp.eq.s32.totalorder %v1311, 1
      %vm1318 = vcmp.eq.s32.totalorder %v1312, 1
      %vm1319 = vcmp.eq.s32.totalorder %v1313, 1
      %vm1320 = vcmp.eq.s32.totalorder %v1314, 1
      %vm1321 = vcmp.eq.s32.totalorder %v1315, 1
      %v1322 = vsel %vm1316, %v880, 0.0
      %v1323 = vsel %vm1317, %v882, 0.0
      %v1324 = vsel %vm1318, %v961, 0.0
      %v1325 = vsel %vm1319, %v963, 0.0
      %v1326 = vsel %vm1320, %v1042, 0.0
      %v1327 = vsel %vm1321, %v1044, 0.0
      %v1328 = vadd.f32 %v1298, %v1322
      %v1329 = vadd.f32 %v1299, %v1323
      %v1330 = vadd.f32 %v1300, %v1324
      %v1331 = vadd.f32 %v1301, %v1325
      %v1332 = vadd.f32 %v1302, %v1326
      %v1333 = vadd.f32 %v1303, %v1327
      %vm1334 = vcmp.eq.s32.totalorder %v1144, 5
      %vm1335 = vcmp.eq.s32.totalorder %v1153, 5
      %vm1336 = vcmp.eq.s32.totalorder %v1162, 5
      %vm1337 = vcmp.eq.s32.totalorder %v1171, 5
      %vm1338 = vcmp.eq.s32.totalorder %v1180, 5
      %vm1339 = vcmp.eq.s32.totalorder %v1189, 5
      %v1340 = vsel %vm1334, 1, 0
      %v1341 = vsel %vm1335, 1, 0
      %v1342 = vsel %vm1336, 1, 0
      %v1343 = vsel %vm1337, 1, 0
      %v1344 = vsel %vm1338, 1, 0
      %v1345 = vsel %vm1339, 1, 0
      %vm1346 = vcmp.eq.s32.totalorder %v1340, 1
      %vm1347 = vcmp.eq.s32.totalorder %v1341, 1
      %vm1348 = vcmp.eq.s32.totalorder %v1342, 1
      %vm1349 = vcmp.eq.s32.totalorder %v1343, 1
      %vm1350 = vcmp.eq.s32.totalorder %v1344, 1
      %vm1351 = vcmp.eq.s32.totalorder %v1345, 1
      %v1352 = vsel %vm1346, %v884, 0.0
      %v1353 = vsel %vm1347, %v886, 0.0
      %v1354 = vsel %vm1348, %v965, 0.0
      %v1355 = vsel %vm1349, %v967, 0.0
      %v1356 = vsel %vm1350, %v1046, 0.0
      %v1357 = vsel %vm1351, %v1048, 0.0
      %v1358 = vadd.f32 %v1328, %v1352
      %v1359 = vadd.f32 %v1329, %v1353
      %v1360 = vadd.f32 %v1330, %v1354
      %v1361 = vadd.f32 %v1331, %v1355
      %v1362 = vadd.f32 %v1332, %v1356
      %v1363 = vadd.f32 %v1333, %v1357
      %vm1364 = vcmp.eq.s32.totalorder %v1144, 6
      %vm1365 = vcmp.eq.s32.totalorder %v1153, 6
      %vm1366 = vcmp.eq.s32.totalorder %v1162, 6
      %vm1367 = vcmp.eq.s32.totalorder %v1171, 6
      %vm1368 = vcmp.eq.s32.totalorder %v1180, 6
      %vm1369 = vcmp.eq.s32.totalorder %v1189, 6
      %v1370 = vsel %vm1364, 1, 0
      %v1371 = vsel %vm1365, 1, 0
      %v1372 = vsel %vm1366, 1, 0
      %v1373 = vsel %vm1367, 1, 0
      %v1374 = vsel %vm1368, 1, 0
      %v1375 = vsel %vm1369, 1, 0
      %vm1376 = vcmp.eq.s32.totalorder %v1370, 1
      %vm1377 = vcmp.eq.s32.totalorder %v1371, 1
      %vm1378 = vcmp.eq.s32.totalorder %v1372, 1
      %vm1379 = vcmp.eq.s32.totalorder %v1373, 1
      %vm1380 = vcmp.eq.s32.totalorder %v1374, 1
      %vm1381 = vcmp.eq.s32.totalorder %v1375, 1
      %v1382 = vsel %vm1376, %v890, 0.0
      %v1383 = vsel %vm1377, %v892, 0.0
      %v1384 = vsel %vm1378, %v971, 0.0
      %v1385 = vsel %vm1379, %v973, 0.0
      %v1386 = vsel %vm1380, %v1052, 0.0
      %v1387 = vsel %vm1381, %v1054, 0.0
      %v1388 = vadd.f32 %v1358, %v1382
      %v1389 = vadd.f32 %v1359, %v1383
      %v1390 = vadd.f32 %v1360, %v1384
      %v1391 = vadd.f32 %v1361, %v1385
      %v1392 = vadd.f32 %v1362, %v1386
      %v1393 = vadd.f32 %v1363, %v1387
      %vm1394 = vcmp.eq.s32.totalorder %v1144, 7
      %vm1395 = vcmp.eq.s32.totalorder %v1153, 7
      %vm1396 = vcmp.eq.s32.totalorder %v1162, 7
      %vm1397 = vcmp.eq.s32.totalorder %v1171, 7
      %vm1398 = vcmp.eq.s32.totalorder %v1180, 7
      %vm1399 = vcmp.eq.s32.totalorder %v1189, 7
      %v1400 = vsel %vm1394, 1, 0
      %v1401 = vsel %vm1395, 1, 0
      %v1402 = vsel %vm1396, 1, 0
      %v1403 = vsel %vm1397, 1, 0
      %v1404 = vsel %vm1398, 1, 0
      %v1405 = vsel %vm1399, 1, 0
      %vm1406 = vcmp.eq.s32.totalorder %v1400, 1
      %vm1407 = vcmp.eq.s32.totalorder %v1401, 1
      %vm1408 = vcmp.eq.s32.totalorder %v1402, 1
      %vm1409 = vcmp.eq.s32.totalorder %v1403, 1
      %vm1410 = vcmp.eq.s32.totalorder %v1404, 1
      %vm1411 = vcmp.eq.s32.totalorder %v1405, 1
      %v1412 = vsel %vm1406, %v894, 0.0
      %v1413 = vsel %vm1407, %v896, 0.0
      %v1414 = vsel %vm1408, %v975, 0.0
      %v1415 = vsel %vm1409, %v977, 0.0
      %v1416 = vsel %vm1410, %v1056, 0.0
      %v1417 = vsel %vm1411, %v1058, 0.0
      %v1418 = vadd.f32 %v1388, %v1412
      %v1419 = vadd.f32 %v1389, %v1413
      %v1420 = vadd.f32 %v1390, %v1414
      %v1421 = vadd.f32 %v1391, %v1415
      %v1422 = vadd.f32 %v1392, %v1416
      %v1423 = vadd.f32 %v1393, %v1417
      %v1424 = vld [vmem:[%s3] sm:$0xff]
      %1426 = vset.pattern.permute.xlu0 0
      %1427 = vperm.xlu0 %1426, %v1424
      %v1428 = vpop.permute.xlu0 %1427
      %v1430 = vmul.f32 %v1418, %v1428
      %v1431 = vmul.f32 %v1419, %v1428
      %v1432 = vmul.f32 %v1420, %v1428
      %v1433 = vmul.f32 %v1421, %v1428
      %v1434 = vmul.f32 %v1422, %v1428
      %v1435 = vmul.f32 %v1423, %v1428
      %v1436 = vld [vmem:[%s4] sm:$0xff]
      %1438 = vset.pattern.permute.xlu0 0
      %1439 = vperm.xlu0 %1438, %v1436
      %v1440 = vpop.permute.xlu0 %1439
      %v1442 = vadd.f32 %v1430, %v1440
      %v1443 = vadd.f32 %v1431, %v1440
      %v1444 = vadd.f32 %v1432, %v1440
      %v1445 = vadd.f32 %v1433, %v1440
      %v1446 = vadd.f32 %v1434, %v1440
      %v1447 = vadd.f32 %v1435, %v1440
      %v1448 = vmax.f32 %v1442, 0.0
      %v1449 = vmax.f32 %v1443, 0.0
      %v1450 = vmax.f32 %v1444, 0.0
      %v1451 = vmax.f32 %v1445, 0.0
      %v1452 = vmax.f32 %v1446, 0.0
      %v1453 = vmax.f32 %v1447, 0.0
      %v1454 = vld [vmem:[%s296] sm:$0x3f]
      %v1456 = vlaneseq
      %v1457 = vshrl.u32 %v1456, 7
      %v1458 = vsub.s32 0, %v1457
      %v1459 = vrot.slane %v1454, %v1458
      %v1460 = vlaneseq
      %v1461 = vshrl.u32 %v1460, 7
      %v1462 = vsub.s32 1, %v1461
      %v1463 = vrot.slane %v1454, %v1462
      %v1464 = vlaneseq
      %v1465 = vshrl.u32 %v1464, 7
      %v1466 = vsub.s32 2, %v1465
      %v1467 = vrot.slane %v1454, %v1466
      %v1468 = vlaneseq
      %v1469 = vshrl.u32 %v1468, 7
      %v1470 = vsub.s32 3, %v1469
      %v1471 = vrot.slane %v1454, %v1470
      %v1472 = vlaneseq
      %v1473 = vshrl.u32 %v1472, 7
      %v1474 = vsub.s32 4, %v1473
      %v1475 = vrot.slane %v1454, %v1474
      %v1476 = vlaneseq
      %v1477 = vshrl.u32 %v1476, 7
      %v1478 = vsub.s32 5, %v1477
      %v1479 = vrot.slane %v1454, %v1478
      %v1486 = vmul.f32 %v1448, %v1459
      %v1487 = vmul.f32 %v1449, %v1463
      %v1488 = vmul.f32 %v1450, %v1467
      %v1489 = vmul.f32 %v1451, %v1471
      %v1490 = vmul.f32 %v1452, %v1475
      %v1491 = vmul.f32 %v1453, %v1479
      %v1492 = vpack.c.bf16 %v1486, %v1486
      %v1493 = vpack.c.bf16 %v1487, %v1487
      %v1494 = vpack.c.bf16 %v1488, %v1488
      %v1495 = vpack.c.bf16 %v1489, %v1489
      %v1496 = vpack.c.bf16 %v1490, %v1490
      %v1497 = vpack.c.bf16 %v1491, %v1491
      %v1504 = vunpack.c.l.b16 %v1492
      %v1505 = vunpack.c.l.b16 %v1493
      %v1506 = vunpack.c.l.b16 %v1494
      %v1507 = vunpack.c.l.b16 %v1495
      %v1508 = vunpack.c.l.b16 %v1496
      %v1509 = vunpack.c.l.b16 %v1497
      %v1510 = vpack.c.b16 %v1505, %v1504
      %v1511 = vpack.c.b16 %v1507, %v1506
      %v1512 = vpack.c.b16 %v1509, %v1508
      %1516 = vst [vmem:[%s305] sm:$0xff] %v1510
      %1517 = vst [vmem:[%s305 + $0x8] sm:$0xff] %v1511
      %1518 = vst [vmem:[%s305 + $0x10] sm:$0xff] %v1512
      %s1519 = smul.u32 6, %s24
      %p1520 = scmp.lt.s32.totalorder %s23, 1
      %s1521 = scalar_select %p1520, %s23, 1
      %p1522 = scmp.lt.s32.totalorder %s1519, 5
      %s1523 = scalar_select %p1522, %s1519, 5
      %s1524 = smul.addr %s1521, 6
      %s1525 = sadd.s32 %s1523, %s1524
      %s1526 = smul.addr %s1525, 4
      %s1527 = scalar_lea.vmem %s6, %s1526
      %s1528 = smul.u32 6, %s24
      %p1529 = scmp.lt.s32.totalorder %s23, 1
      %s1530 = scalar_select %p1529, %s23, 1
      %p1531 = scmp.lt.s32.totalorder %s1528, 5
      %s1532 = scalar_select %p1531, %s1528, 5
      %s1533 = smul.addr %s1530, 6
      %s1534 = sadd.s32 %s1532, %s1533
      %s1535 = smul.addr %s1534, 8
      %s1536 = scalar_lea.vmem %s7, %s1535
      // Predicated region
      $region123: #{dr_double_conv_forward.2} parent=39 // pred_check
        %p1537 = pneg %p166
      $region124: #{dr_double_conv_forward.2} parent=39 // pred_check_branch
        %1539 = sbr.rel (%p1537) target = $region126
      $region125: #{dr_double_conv_forward.2} parent=39 // pred_region
        %s1540 = smul.u32 6, %s24
      $region126: #{dr_double_conv_forward.2} parent=39 // pred_fallthru
        _
      // Predicated region
      $region127: #{dr_double_conv_forward.2} parent=39 // pred_check
        %p1541 = pneg %p194
      $region128: #{dr_double_conv_forward.2} parent=39 // pred_check_branch
        %1543 = sbr.rel (%p1541) target = $region130
      $region129: #{dr_double_conv_forward.2} parent=39 // pred_region
        %s1544 = smul.u32 6, %s24
      $region130: #{dr_double_conv_forward.2} parent=39 // pred_fallthru
        _
    $region40: #{dr_double_conv_forward.2} parent=5 // pred_fallthru
      _
    %p1545 = scmp.le.s32.totalorder 2, %s14
    // Predicated region
    $region131: #{dr_double_conv_forward.2} parent=5 // pred_check
      %p1546 = pneg %p1545
    $region132: #{dr_double_conv_forward.2} parent=5 // pred_check_branch
      %1548 = sbr.rel (%p1546) target = $region134
    $region133: #{dr_double_conv_forward.2} parent=5 // pred_region
      %s1549 = ssub.s32 %s14, 2
      // Predicated region
      $region135: #{dr_double_conv_forward.2} parent=133 // pred_check
        %p1550 = pneg %p172
      $region136: #{dr_double_conv_forward.2} parent=133 // pred_check_branch
        %1552 = sbr.rel (%p1550) target = $region138
      $region137: #{dr_double_conv_forward.2} parent=133 // pred_region
        %s1553 = smul.u32 6, %s26
        %p1554 = scmp.lt.s32.totalorder %s25, 1
        %s1555 = scalar_select %p1554, %s25, 1
        %p1556 = scmp.lt.s32.totalorder %s1553, 5
        %s1557 = scalar_select %p1556, %s1553, 5
        %s1558 = smul.addr %s1555, 6
        %s1559 = sadd.s32 %s1557, %s1558
        %s1560 = smul.addr %s1559, 4
        %s1561 = scalar_lea.vmem %s6, %s1560
      $region138: #{dr_double_conv_forward.2} parent=133 // pred_fallthru
        _
      // Predicated region
      $region139: #{dr_double_conv_forward.2} parent=133 // pred_check
        %p1562 = pneg %p200
      $region140: #{dr_double_conv_forward.2} parent=133 // pred_check_branch
        %1564 = sbr.rel (%p1562) target = $region142
      $region141: #{dr_double_conv_forward.2} parent=133 // pred_region
        %s1565 = smul.u32 6, %s26
        %p1566 = scmp.lt.s32.totalorder %s25, 1
        %s1567 = scalar_select %p1566, %s25, 1
        %p1568 = scmp.lt.s32.totalorder %s1565, 5
        %s1569 = scalar_select %p1568, %s1565, 5
        %s1570 = smul.addr %s1567, 6
        %s1571 = sadd.s32 %s1569, %s1570
        %s1572 = smul.addr %s1571, 8
        %s1573 = scalar_lea.vmem %s7, %s1572
      $region142: #{dr_double_conv_forward.2} parent=133 // pred_fallthru
        _
    $region134: #{dr_double_conv_forward.2} parent=5 // pred_fallthru
      _
  $region6: #{dr_double_conv_forward.2} parent=0 // loop_footer
    %s18 = sadd.s32 1, %s14
  $region7: #{dr_double_conv_forward.2} parent=0 // loop_footer_branch
    %13 = sbr.rel target = $region3
  $region8: #{dr_double_conv_forward.2} parent=0 // loop_exit
    _
  %1574 = vsyncmov [#allocation3]
  %s1575 = vpop.sfrf %1574
  %p1576 = scmp.eq.s32.totalorder %s1575, 0
  %p1577 = pneg %p1576
  %1579 = shalt.err (%p1577)
  %s1580 = scalar_lea.sflag [#allocation3], 1
  %1581 = vsyncmov %s1580
  %s1582 = vpop.sfrf %1581
  %p1583 = scmp.eq.s32.totalorder %s1582, 0
  %p1584 = pneg %p1583
  %1586 = shalt.err (%p1584)

</llo_original>
